<compile_context>
chip_gen: v5e
topology: v5e:2x2
jax: 0.10.0
libtpu: 0.0.40
codegen_flags: <defaults>
</compile_context>

<pallas_src>
import functools
import math

import jax
import jax.numpy as jnp
from jax.experimental import pallas as pl
from jax.experimental.pallas import tpu as pltpu


def _round_up(x, m):
    return ((x + m - 1) // m) * m


def _pick_ffn_tile(F, tf_req):
    """Largest divisor of F that is a multiple of 128 and <= tf_req, else F."""
    best = F
    t = 128
    while t <= min(tf_req, F):
        if F % t == 0:
            best = t
        t += 128
    if best > tf_req and F % 128 != 0:
        return F            # full-dim block is always legal
    return best if best <= max(tf_req, 128) or best == F else F


# ----------------------------------------------------------------------------
# Fused kernels (in-projection + activation + out-projection)
# ----------------------------------------------------------------------------
def fused_swiglu_mlp_kernel(x_ref, w_in_ref, b_in_ref, w_g_ref, b_g_ref,
                            w_out_ref, b_out_ref, o_ref, acc_ref):
    # x_ref: (tm, H)   w_in_ref/w_g_ref: (H, tf)   b_in/b_g: (1, tf)
    # w_out_ref: (tf, H)   b_out_ref: (1, H)   o_ref/acc_ref: (tm, H)
    j = pl.program_id(1)

    @pl.when(j == 0)
    def _():
        acc_ref[...] = jnp.zeros_like(acc_ref)

    x = x_ref[...]
    h = jnp.dot(x, w_in_ref[...], preferred_element_type=jnp.float32) + b_in_ref[...]
    g = jnp.dot(x, w_g_ref[...], preferred_element_type=jnp.float32) + b_g_ref[...]
    inter = (h * jax.nn.sigmoid(h)) * g          # silu(h) * gate (EUP + VPU)
    acc_ref[...] += jnp.dot(inter.astype(w_out_ref.dtype), w_out_ref[...],
                            preferred_element_type=jnp.float32)

    @pl.when(j == pl.num_programs(1) - 1)
    def _():
        o_ref[...] = (acc_ref[...] + b_out_ref[...]).astype(o_ref.dtype)


def fused_gelu_mlp_kernel(x_ref, w_in_ref, b_in_ref,
                          w_out_ref, b_out_ref, o_ref, acc_ref):
    j = pl.program_id(1)

    @pl.when(j == 0)
    def _():
        acc_ref[...] = jnp.zeros_like(acc_ref)

    x = x_ref[...]
    h = jnp.dot(x, w_in_ref[...], preferred_element_type=jnp.float32) + b_in_ref[...]
    # torch.nn.functional.gelu default is the exact (erf) gelu
    inter = 0.5 * h * (1.0 + jax.lax.erf(h * (1.0 / math.sqrt(2.0))))
    acc_ref[...] += jnp.dot(inter.astype(w_out_ref.dtype), w_out_ref[...],
                            preferred_element_type=jnp.float32)

    @pl.when(j == pl.num_programs(1) - 1)
    def _():
        o_ref[...] = (acc_ref[...] + b_out_ref[...]).astype(o_ref.dtype)


# ----------------------------------------------------------------------------
# Wrapper (pallas_call plumbing)
# ----------------------------------------------------------------------------
def _fused_mlp(x, params, mlp_type, tm, tf):
    M, H = x.shape
    F = params["w_in"].shape[1]
    itemsize = jnp.dtype(x.dtype).itemsize

    # --- tile selection ----------------------------------------------------
    tm_eff = min(_round_up(tm, 8), _round_up(M, 8))
    M_pad = _round_up(M, tm_eff)
    if M_pad != M:
        x = jnp.pad(x, ((0, M_pad - M), (0, 0)))   # zero rows; sliced off below
    tf_eff = _pick_ffn_tile(F, tf)
    grid = (M_pad // tm_eff, F // tf_eff)

    # --- VMEM budget (double-buffered inputs + output + f32 accumulator) ----
    n_gate = 2 if mlp_type == "swiglu" else 1
    per_buf_elems = (tm_eff * H                        # x block
                     + n_gate * (H * tf_eff + tf_eff)  # w_in(+w_gate) + biases
                     + tf_eff * H + H)                 # w_out + b_out
    vmem_bytes = (2 * per_buf_elems * itemsize         # double-buffered inputs
                  + 2 * tm_eff * H * itemsize          # output buffers
                  + tm_eff * H * 4)                    # f32 accumulator scratch
    vmem_limit = int(min(max(2 * vmem_bytes, 4 << 20), 48 << 20))

    # --- specs ---------------------------------------------------------------
    if mlp_type == "swiglu":
        kernel = fused_swiglu_mlp_kernel
        in_specs = [
            pl.BlockSpec((tm_eff, H), lambda i, j: (i, 0)),   # x
            pl.BlockSpec((H, tf_eff), lambda i, j: (0, j)),   # w_in
            pl.BlockSpec((1, tf_eff), lambda i, j: (0, j)),   # b_in
            pl.BlockSpec((H, tf_eff), lambda i, j: (0, j)),   # w_gate
            pl.BlockSpec((1, tf_eff), lambda i, j: (0, j)),   # b_gate
            pl.BlockSpec((tf_eff, H), lambda i, j: (j, 0)),   # w_out
            pl.BlockSpec((1, H), lambda i, j: (0, 0)),        # b_out
        ]
        args = (x, params["w_in"], params["b_in"], params["w_gate"],
                params["b_gate"], params["w_out"], params["b_out"])
    else:  # simple_gelu
        kernel = fused_gelu_mlp_kernel
        in_specs = [
            pl.BlockSpec((tm_eff, H), lambda i, j: (i, 0)),   # x
            pl.BlockSpec((H, tf_eff), lambda i, j: (0, j)),   # w_in
            pl.BlockSpec((1, tf_eff), lambda i, j: (0, j)),   # b_in
            pl.BlockSpec((tf_eff, H), lambda i, j: (j, 0)),   # w_out
            pl.BlockSpec((1, H), lambda i, j: (0, 0)),        # b_out
        ]
        args = (x, params["w_in"], params["b_in"],
                params["w_out"], params["b_out"])

    out = pl.pallas_call(
        kernel,
        out_shape=jax.ShapeDtypeStruct((M_pad, H), x.dtype),
        grid_spec=pltpu.PrefetchScalarGridSpec(
            num_scalar_prefetch=0,
            grid=grid,
            in_specs=in_specs,
            # same (i, 0) output block across the reduction axis -> resident acc
            out_specs=pl.BlockSpec((tm_eff, H), lambda i, j: (i, 0)),
            scratch_shapes=[pltpu.VMEM((tm_eff, H), jnp.float32)],
        ),
        compiler_params=pltpu.CompilerParams(
            dimension_semantics=("parallel", "arbitrary"),
            vmem_limit_bytes=vmem_limit,
        ),
    )(*args)

    if M_pad != M:
        out = out[:M]
    return out


@functools.partial(jax.jit, static_argnames=("mlp_type", "tm", "tf"))
def mlp_forward(hidden_states, params, *, mlp_type="swiglu", tm=256, tf=512):
    """hidden_states: [batch, seq, hidden].  Returns same shape/dtype."""
    B, S, H = hidden_states.shape
    x = hidden_states.reshape(B * S, H)
    out = _fused_mlp(x, params, mlp_type, tm, tf)
    return out.reshape(B, S, H)


# ----------------------------------------------------------------------------
# Deterministic parameter init (pythia-style std; shapes from module __init__)
# ----------------------------------------------------------------------------
def init_params(key, hidden_size, mlp_factor, num_layers, dtype=jnp.float32):
    F = int(hidden_size * mlp_factor)
    k1, k2, k3 = jax.random.split(key, 3)
    std_in = math.sqrt(2.0 / (5.0 * hidden_size))
    std_out = 2.0 / num_layers / math.sqrt(hidden_size)
    # stored pre-transposed as [in, out]
    return {
        "w_in":   (jax.random.normal(k1, (hidden_size, F)) * std_in).astype(dtype),
        "b_in":   jnp.zeros((1, F), dtype),
        "w_gate": (jax.random.normal(k2, (hidden_size, F)) * std_in).astype(dtype),
        "b_gate": jnp.zeros((1, F), dtype),
        "w_out":  (jax.random.normal(k3, (F, hidden_size)) * std_out).astype(dtype),
        "b_out":  jnp.zeros((1, hidden_size), dtype),
    }


# ----------------------------------------------------------------------------
# Reference (pure JAX) for sanity check
# ----------------------------------------------------------------------------
def mlp_reference(hidden_states, params, mlp_type="swiglu"):
    x = hidden_states
    h = x @ params["w_in"] + params["b_in"][0]
    if mlp_type == "swiglu":
        g = x @ params["w_gate"] + params["b_gate"][0]
        inter = jax.nn.silu(h) * g
    else:
        inter = 0.5 * h * (1.0 + jax.lax.erf(h / jnp.sqrt(2.0)))
    return inter @ params["w_out"] + params["b_out"][0]


if __name__ == "__main__":
    # small shapes: batch=2, seq=64, hidden=128, mlp_factor=4 -> ffn=512, M=128
    B, S, H = 2, 64, 128
    MLP_FACTOR, NUM_LAYERS = 4, 12

    key = jax.random.PRNGKey(0)
    kx, kp = jax.random.split(key)
    x = jax.random.normal(kx, (B, S, H), dtype=jnp.float32)
    params = init_params(kp, H, MLP_FACTOR, NUM_LAYERS, dtype=jnp.float32)

    # swiglu path (primary); tf=256 exercises the 2-step FFN reduction + acc
    out = mlp_forward(x, params, mlp_type="swiglu", tf=256)
    out = jax.block_until_ready(out)
    ref = mlp_reference(x, params, "swiglu")
    assert out.shape == x.shape and out.dtype == x.dtype
    assert jnp.allclose(out, ref, atol=1e-4, rtol=1e-4), "swiglu mismatch"

    # swiglu single-step reduction path (tf = full F)
    out_1 = mlp_forward(x, params, mlp_type="swiglu", tf=512)
    out_1 = jax.block_until_ready(out_1)
    assert jnp.allclose(out_1, ref, atol=1e-4, rtol=1e-4), "swiglu (tf=F) mismatch"

    # simple_gelu path
    out_g = mlp_forward(x, params, mlp_type="simple_gelu", tf=256)
    out_g = jax.block_until_ready(out_g)
    ref_g = mlp_reference(x, params, "simple_gelu")
    assert jnp.allclose(out_g, ref_g, atol=1e-4, rtol=1e-4), "gelu mismatch"

    print("KERNEL_OK")
</pallas_src>

<mosaic_0001>
module attributes {stable_mosaic.version = 11 : i64} {
  func.func @fused_swiglu_mlp_kernel(%arg0: i32, %arg1: i32, %arg2: memref<128x128xf32, #tpu.memory_space<vmem>>, %arg3: memref<128x256xf32, #tpu.memory_space<vmem>>, %arg4: memref<1x256xf32, #tpu.memory_space<vmem>>, %arg5: memref<128x256xf32, #tpu.memory_space<vmem>>, %arg6: memref<1x256xf32, #tpu.memory_space<vmem>>, %arg7: memref<256x128xf32, #tpu.memory_space<vmem>>, %arg8: memref<1x128xf32, #tpu.memory_space<vmem>>, %arg9: memref<128x128xf32, #tpu.memory_space<vmem>>, %arg10: memref<128x128xf32, #tpu.memory_space<vmem>>) attributes {dimension_semantics = [#tpu.dimension_semantics<parallel>, #tpu.dimension_semantics<arbitrary>], iteration_bounds = array<i64: 1, 2>, scalar_prefetch = 0 : i64, scratch_operands = 1 : i64, tpu.core_type = #tpu.core_type<tc>, window_params = [{transform_indices = @transform_0, window_bounds = array<i64: 128, 128>}, {transform_indices = @transform_1, window_bounds = array<i64: 128, 256>}, {transform_indices = @transform_2, window_bounds = array<i64: 1, 256>}, {transform_indices = @transform_3, window_bounds = array<i64: 128, 256>}, {transform_indices = @transform_4, window_bounds = array<i64: 1, 256>}, {transform_indices = @transform_5, window_bounds = array<i64: 256, 128>}, {pipeline_mode = #tpu.pipeline_mode<synchronous>, transform_indices = @transform_6, window_bounds = array<i64: 1, 128>}, {transform_indices = @transform_7, window_bounds = array<i64: 128, 128>}]} {
    %c0_i32 = arith.constant 0 : i32
    %0 = arith.cmpi eq, %arg1, %c0_i32 : i32
    %1 = arith.extui %0 : i1 to i32
    %c0_i32_0 = arith.constant 0 : i32
    %2 = arith.cmpi ne, %1, %c0_i32_0 : i32
    scf.if %2 {
      %cst_20 = arith.constant 0.000000e+00 : f32
      %29 = vector.broadcast %cst_20 : f32 to vector<128x128xf32>
      %c0_21 = arith.constant 0 : index
      %c0_22 = arith.constant 0 : index
      %30 = vector.load %arg10[%c0_21, %c0_22] : memref<128x128xf32, #tpu.memory_space<vmem>>, vector<128x128xf32>
      tpu.vector_store %arg10[%c0_21, %c0_22], %29 {strides = array<i32>} : memref<128x128xf32, #tpu.memory_space<vmem>>, vector<128x128xf32>,
    } else {
    }
    %c0 = arith.constant 0 : index
    %c0_1 = arith.constant 0 : index
    %3 = vector.load %arg2[%c0, %c0_1] : memref<128x128xf32, #tpu.memory_space<vmem>>, vector<128x128xf32>
    %c0_2 = arith.constant 0 : index
    %c0_3 = arith.constant 0 : index
    %4 = vector.load %arg3[%c0_2, %c0_3] : memref<128x256xf32, #tpu.memory_space<vmem>>, vector<128x256xf32>
    %cst = arith.constant dense<0.000000e+00> : vector<128x256xf32>
    %5 = tpu.matmul %3, %4, %cst {dimension_numbers = #tpu.dot_dimension_numbers<[1], [0], [0], [1], [0, 0, 1, 1], [], []>} : vector<128x128xf32>, vector<128x256xf32>, vector<128x256xf32> -> vector<128x256xf32>
    %c0_4 = arith.constant 0 : index
    %c0_5 = arith.constant 0 : index
    %6 = vector.load %arg4[%c0_4, %c0_5] : memref<1x256xf32, #tpu.memory_space<vmem>>, vector<1x256xf32>
    %7 = vector.broadcast %6 : vector<1x256xf32> to vector<128x256xf32>
    %8 = arith.addf %5, %7 : vector<128x256xf32>
    %c0_6 = arith.constant 0 : index
    %c0_7 = arith.constant 0 : index
    %9 = vector.load %arg5[%c0_6, %c0_7] : memref<128x256xf32, #tpu.memory_space<vmem>>, vector<128x256xf32>
    %cst_8 = arith.constant dense<0.000000e+00> : vector<128x256xf32>
    %10 = tpu.matmul %3, %9, %cst_8 {dimension_numbers = #tpu.dot_dimension_numbers<[1], [0], [0], [1], [0, 0, 1, 1], [], []>} : vector<128x128xf32>, vector<128x256xf32>, vector<128x256xf32> -> vector<128x256xf32>
    %c0_9 = arith.constant 0 : index
    %c0_10 = arith.constant 0 : index
    %11 = vector.load %arg6[%c0_9, %c0_10] : memref<1x256xf32, #tpu.memory_space<vmem>>, vector<1x256xf32>
    %12 = vector.broadcast %11 : vector<1x256xf32> to vector<128x256xf32>
    %13 = arith.addf %10, %12 : vector<128x256xf32>
    %14 = arith.negf %8 : vector<128x256xf32>
    %15 = math.exp %14 : vector<128x256xf32>
    %cst_11 = arith.constant 1.000000e+00 : f32
    %16 = vector.broadcast %cst_11 : f32 to vector<128x256xf32>
    %17 = arith.addf %16, %15 : vector<128x256xf32>
    %18 = arith.divf %16, %17 : vector<128x256xf32>
    %19 = arith.mulf %8, %18 : vector<128x256xf32>
    %20 = arith.mulf %19, %13 : vector<128x256xf32>
    %c0_12 = arith.constant 0 : index
    %c0_13 = arith.constant 0 : index
    %21 = vector.load %arg10[%c0_12, %c0_13] : memref<128x128xf32, #tpu.memory_space<vmem>>, vector<128x128xf32>
    %c0_14 = arith.constant 0 : index
    %c0_15 = arith.constant 0 : index
    %22 = vector.load %arg7[%c0_14, %c0_15] : memref<256x128xf32, #tpu.memory_space<vmem>>, vector<256x128xf32>
    %cst_16 = arith.constant dense<0.000000e+00> : vector<128x128xf32>
    %23 = tpu.matmul %20, %22, %cst_16 {dimension_numbers = #tpu.dot_dimension_numbers<[1], [0], [0], [1], [0, 0, 1, 1], [], []>} : vector<128x256xf32>, vector<256x128xf32>, vector<128x128xf32> -> vector<128x128xf32>
    %24 = arith.addf %21, %23 : vector<128x128xf32>
    %c0_17 = arith.constant 0 : index
    %c0_18 = arith.constant 0 : index
    %25 = vector.load %arg10[%c0_17, %c0_18] : memref<128x128xf32, #tpu.memory_space<vmem>>, vector<128x128xf32>
    tpu.vector_store %arg10[%c0_17, %c0_18], %24 {strides = array<i32>} : memref<128x128xf32, #tpu.memory_space<vmem>>, vector<128x128xf32>,
    %c1_i32 = arith.constant 1 : i32
    %26 = arith.cmpi eq, %arg1, %c1_i32 : i32
    %27 = arith.extui %26 : i1 to i32
    %c0_i32_19 = arith.constant 0 : i32
    %28 = arith.cmpi ne, %27, %c0_i32_19 : i32
    scf.if %28 {
      %c0_20 = arith.constant 0 : index
      %c0_21 = arith.constant 0 : index
      %29 = vector.load %arg10[%c0_20, %c0_21] : memref<128x128xf32, #tpu.memory_space<vmem>>, vector<128x128xf32>
      %c0_22 = arith.constant 0 : index
      %c0_23 = arith.constant 0 : index
      %30 = vector.load %arg8[%c0_22, %c0_23] : memref<1x128xf32, #tpu.memory_space<vmem>>, vector<1x128xf32>
      %31 = vector.broadcast %30 : vector<1x128xf32> to vector<128x128xf32>
      %32 = arith.addf %29, %31 : vector<128x128xf32>
      %c0_24 = arith.constant 0 : index
      %c0_25 = arith.constant 0 : index
      %33 = vector.load %arg9[%c0_24, %c0_25] : memref<128x128xf32, #tpu.memory_space<vmem>>, vector<128x128xf32>
      tpu.vector_store %arg9[%c0_24, %c0_25], %32 {strides = array<i32>} : memref<128x128xf32, #tpu.memory_space<vmem>>, vector<128x128xf32>,
    } else {
    }
    return
  }
  func.func @transform_0(%arg0: i32, %arg1: i32) -> (i32, i32) {
    %c0_i32 = arith.constant 0 : i32
    %c0_i32_0 = arith.constant 0 : i32
    return %arg0, %c0_i32 : i32, i32
  }
  func.func @transform_1(%arg0: i32, %arg1: i32) -> (i32, i32) {
    %c0_i32 = arith.constant 0 : i32
    %c0_i32_0 = arith.constant 0 : i32
    return %c0_i32, %arg1 : i32, i32
  }
  func.func @transform_2(%arg0: i32, %arg1: i32) -> (i32, i32) {
    %c0_i32 = arith.constant 0 : i32
    %c0_i32_0 = arith.constant 0 : i32
    return %c0_i32, %arg1 : i32, i32
  }
  func.func @transform_3(%arg0: i32, %arg1: i32) -> (i32, i32) {
    %c0_i32 = arith.constant 0 : i32
    %c0_i32_0 = arith.constant 0 : i32
    return %c0_i32, %arg1 : i32, i32
  }
  func.func @transform_4(%arg0: i32, %arg1: i32) -> (i32, i32) {
    %c0_i32 = arith.constant 0 : i32
    %c0_i32_0 = arith.constant 0 : i32
    return %c0_i32, %arg1 : i32, i32
  }
  func.func @transform_5(%arg0: i32, %arg1: i32) -> (i32, i32) {
    %c0_i32 = arith.constant 0 : i32
    %c0_i32_0 = arith.constant 0 : i32
    return %arg1, %c0_i32 : i32, i32
  }
  func.func @transform_6(%arg0: i32, %arg1: i32) -> (i32, i32) {
    %c0_i32 = arith.constant 0 : i32
    %c0_i32_0 = arith.constant 0 : i32
    %c0_i32_1 = arith.constant 0 : i32
    return %c0_i32, %c0_i32_0 : i32, i32
  }
  func.func @transform_7(%arg0: i32, %arg1: i32) -> (i32, i32) {
    %c0_i32 = arith.constant 0 : i32
    %c0_i32_0 = arith.constant 0 : i32
    return %arg0, %c0_i32 : i32, i32
  }
}

</mosaic_0001>

<llo_original>
// kernel: mlp_forward.1
$region0: #{mlp_forward.1}
  #allocation0 [shape = 'u32[]', space=smem, size = 0x4, offset = 0x4, fixed_abs, tag = 'smem constant byte address 0x4 - core index']
  #allocation1 [shape = 'u32[72,128]{1,0:T(1,128)}', space=vmem, size = 0x9000, scoped, tag = 'internal scratch']
  #allocation2 [shape = 'f32[128,128]{1,0:T(8,128)}', space=vmem, size = 0x10000, scoped, tag = 'scratch operand']
  %s0 = inlined_call_operand.hbm [shape: f32[128,128], index: 0, kind: input, shape index: {}]
  %s1 = inlined_call_operand.hbm [shape: f32[128,512], index: 1, kind: input, shape index: {}]
  %s2 = inlined_call_operand.hbm [shape: f32[1,512], index: 2, kind: input, shape index: {}]
  %s3 = inlined_call_operand.hbm [shape: f32[128,512], index: 3, kind: input, shape index: {}]
  %s4 = inlined_call_operand.hbm [shape: f32[1,512], index: 4, kind: input, shape index: {}]
  %s5 = inlined_call_operand.hbm [shape: f32[512,128], index: 5, kind: input, shape index: {}]
  %s6 = inlined_call_operand.vmem [shape: f32[1,128], index: 6, kind: input, shape index: {}]
  %s7 = inlined_call_operand.hbm [shape: f32[128,128], index: 7, kind: output, shape index: {}]
  %s8 = sld [smem:[#allocation0]]
  $region93: #{mlp_forward.1} parent=0
    _
  %s10 = ssub.s32 1, %s8
  %s11 = scalar_select 0, %s10, %s8
  $region1: #{mlp_forward.1} parent=0
    #allocation3 [shape = 'u8[65536]{0}', space=vmem, size = 0x10000, scoped, tag = 'input window, operand 0, single buffered']
    #allocation4 [shape = 's32[2]{0}', space=sflag, size = 0x8, scoped, tag = 'scoped memory for mlp_forward.1']
    #allocation5 [shape = 's32[2]{0}', space=sflag, size = 0x8, scoped, tag = 'scoped memory for mlp_forward.1']
    #allocation6 [shape = 'u8[262144]{0}', space=vmem, size = 0x40000, scoped, tag = 'input window, operand 1']
    #allocation7 [shape = 's32[2]{0}', space=sflag, size = 0x8, scoped, tag = 'scoped memory for mlp_forward.1']
    #allocation8 [shape = 'u8[2048]{0}', space=vmem, size = 0x800, scoped, tag = 'input window, operand 2']
    #allocation9 [shape = 'u8[262144]{0}', space=vmem, size = 0x40000, scoped, tag = 'input window, operand 3']
    #allocation10 [shape = 's32[2]{0}', space=sflag, size = 0x8, scoped, tag = 'scoped memory for mlp_forward.1']
    #allocation11 [shape = 'u8[2048]{0}', space=vmem, size = 0x800, scoped, tag = 'input window, operand 4']
    #allocation12 [shape = 'u8[262144]{0}', space=vmem, size = 0x40000, scoped, tag = 'input window, operand 5']
    #allocation13 [shape = 's32[2]{0}', space=sflag, size = 0x8, scoped, tag = 'scoped memory for mlp_forward.1']
    #allocation14 [shape = 'u8[65536]{0}', space=vmem, size = 0x10000, scoped, tag = 'output window, operand 0, single buffered']
    %12 = vsyncpa [#allocation4], 0
    %13 = vsyncpa [#allocation7], 0
    %s14 = scalar_lea.sflag [#allocation7], 1
    %15 = vsyncpa %s14, 0
    %16 = vsyncpa [#allocation10], 0
    %s17 = scalar_lea.sflag [#allocation10], 1
    %18 = vsyncpa %s17, 0
    %19 = vsyncpa [#allocation13], 0
    %s20 = scalar_lea.sflag [#allocation13], 1
    %21 = vsyncpa %s20, 0
    %22 = vsyncpa [#allocation5], 0
    loop: start=0, step=1, limit=4
    $region2: #{mlp_forward.1} parent=1 // loop_pre_header
      _
    $region3: #{mlp_forward.1} parent=1 // loop_header
      %s24 = sphi 0, %s28
      %p25 = scmp.ge.s32.totalorder %s24, 4
      %s31 = sphi 0, %s43
      %s32 = sphi 0, %s39
      %s33 = sphi 0, %s31
      %s34 = sphi 0, %s32
      %s35 = sphi 0, %s33
      %s36 = sphi 0, %s34
      %s46 = sphi 0, %s48
      %s49 = sphi 0, %s46
      %s50 = sphi 0, %s49
      %s66 = sphi 0, %s50
      %s72 = sphi 0, %s74
      %s75 = sphi 0, %s72
      %s76 = sphi 0, %s75
      %s92 = sphi 0, %s76
      %s98 = sphi 0, %s100
      %s101 = sphi 0, %s98
      %s102 = sphi 0, %s101
      %s118 = sphi 0, %s102
      %s124 = sphi 0, %s126
      %s127 = sphi 0, %s124
      %s128 = sphi 0, %s127
      %s144 = sphi 0, %s128
      %s150 = sphi 0, %s152
      %s153 = sphi 0, %s150
      %s154 = sphi 0, %s153
      %s170 = sphi 0, %s154
      %s176 = sphi 0, %s178
      %s179 = sphi 0, %s176
      %s180 = sphi 0, %s179
      %s196 = sphi 0, %s180
      %s200 = sphi 0, %s200
      %s202 = sphi 0, %s200
      %s203 = sphi 0, %s202
      %s217 = sphi 0, %s203
      %s223 = sphi 0, %s225
      %s226 = sphi 0, %s223
      %s227 = sphi 0, %s226
      %s243 = sphi 0, %s227
    $region4: #{mlp_forward.1} parent=1 // loop_header_branch
      %27 = sbr.rel (%p25) target = $region8
    $region5: #{mlp_forward.1} parent=1 // loop_body
      %s29 = ssub.s32 %s24, 1
      %s30 = ssub.s32 %s24, 2
      %s37 = sadd.s32 1, %s32
      %p38 = scmp.ge.s32.totalorder %s37, 2
      %s39 = scalar_select %p38, 0, %s37
      %s40 = sadd.s32 1, %s31
      %s41 = scalar_select %p38, %s40, %s31
      %p42 = scmp.ge.s32.totalorder %s41, 1
      %s43 = scalar_select %p42, 0, %s41
      %s44 = ssub.s32 %s31, %s43
      %p45 = scmp.eq.s32.totalorder %s44, 0
      %s47 = sadd.s32 %s46, 1
      %s48 = scalar_select %p45, %s46, %s47
      %p51 = pneg %p45
      %p52 = scmp.eq.s32.totalorder %s24, 1
      %p53 = por %p51, %p52
      %p54 = scmp.ne.s32.totalorder %s46, %s49
      %p55 = scmp.eq.s32.totalorder %s24, 0
      %p56 = por %p54, %p55
      %p57 = scmp.ne.s32.totalorder %s46, %s49
      %p58 = scmp.eq.s32.totalorder %s29, 1
      %p59 = por %p57, %p58
      %p60 = scmp.ne.s32.totalorder %s49, %s50
      %p61 = scmp.eq.s32.totalorder %s29, 0
      %p62 = por %p60, %p61
      %p63 = scmp.ne.s32.totalorder %s49, %s50
      %p64 = scmp.eq.s32.totalorder %s30, 1
      %p65 = por %p63, %p64
      %p67 = scmp.ne.s32.totalorder %s50, %s66
      %p68 = scmp.eq.s32.totalorder %s30, 0
      %p69 = por %p67, %p68
      %s70 = ssub.s32 %s32, %s39
      %p71 = scmp.eq.s32.totalorder %s70, 0
      %s73 = sadd.s32 %s72, 1
      %s74 = scalar_select %p71, %s72, %s73
      %p77 = pneg %p71
      %p78 = scmp.eq.s32.totalorder %s24, 1
      %p79 = por %p77, %p78
      %p80 = scmp.ne.s32.totalorder %s72, %s75
      %p81 = scmp.eq.s32.totalorder %s24, 0
      %p82 = por %p80, %p81
      %p83 = scmp.ne.s32.totalorder %s72, %s75
      %p84 = scmp.eq.s32.totalorder %s29, 1
      %p85 = por %p83, %p84
      %p86 = scmp.ne.s32.totalorder %s75, %s76
      %p87 = scmp.eq.s32.totalorder %s29, 0
      %p88 = por %p86, %p87
      %p89 = scmp.ne.s32.totalorder %s75, %s76
      %p90 = scmp.eq.s32.totalorder %s30, 1
      %p91 = por %p89, %p90
      %p93 = scmp.ne.s32.totalorder %s76, %s92
      %p94 = scmp.eq.s32.totalorder %s30, 0
      %p95 = por %p93, %p94
      %s96 = ssub.s32 %s32, %s39
      %p97 = scmp.eq.s32.totalorder %s96, 0
      %s99 = sadd.s32 %s98, 1
      %s100 = scalar_select %p97, %s98, %s99
      %p103 = pneg %p97
      %p104 = scmp.eq.s32.totalorder %s24, 1
      %p105 = por %p103, %p104
      %p106 = scmp.ne.s32.totalorder %s98, %s101
      %p107 = scmp.eq.s32.totalorder %s24, 0
      %p108 = por %p106, %p107
      %p109 = scmp.ne.s32.totalorder %s98, %s101
      %p110 = scmp.eq.s32.totalorder %s29, 1
      %p111 = por %p109, %p110
      %p112 = scmp.ne.s32.totalorder %s101, %s102
      %p113 = scmp.eq.s32.totalorder %s29, 0
      %p114 = por %p112, %p113
      %p115 = scmp.ne.s32.totalorder %s101, %s102
      %p116 = scmp.eq.s32.totalorder %s30, 1
      %p117 = por %p115, %p116
      %p119 = scmp.ne.s32.totalorder %s102, %s118
      %p120 = scmp.eq.s32.totalorder %s30, 0
      %p121 = por %p119, %p120
      %s122 = ssub.s32 %s32, %s39
      %p123 = scmp.eq.s32.totalorder %s122, 0
      %s125 = sadd.s32 %s124, 1
      %s126 = scalar_select %p123, %s124, %s125
      %p129 = pneg %p123
      %p130 = scmp.eq.s32.totalorder %s24, 1
      %p131 = por %p129, %p130
      %p132 = scmp.ne.s32.totalorder %s124, %s127
      %p133 = scmp.eq.s32.totalorder %s24, 0
      %p134 = por %p132, %p133
      %p135 = scmp.ne.s32.totalorder %s124, %s127
      %p136 = scmp.eq.s32.totalorder %s29, 1
      %p137 = por %p135, %p136
      %p138 = scmp.ne.s32.totalorder %s127, %s128
      %p139 = scmp.eq.s32.totalorder %s29, 0
      %p140 = por %p138, %p139
      %p141 = scmp.ne.s32.totalorder %s127, %s128
      %p142 = scmp.eq.s32.totalorder %s30, 1
      %p143 = por %p141, %p142
      %p145 = scmp.ne.s32.totalorder %s128, %s144
      %p146 = scmp.eq.s32.totalorder %s30, 0
      %p147 = por %p145, %p146
      %s148 = ssub.s32 %s32, %s39
      %p149 = scmp.eq.s32.totalorder %s148, 0
      %s151 = sadd.s32 %s150, 1
      %s152 = scalar_select %p149, %s150, %s151
      %p155 = pneg %p149
      %p156 = scmp.eq.s32.totalorder %s24, 1
      %p157 = por %p155, %p156
      %p158 = scmp.ne.s32.totalorder %s150, %s153
      %p159 = scmp.eq.s32.totalorder %s24, 0
      %p160 = por %p158, %p159
      %p161 = scmp.ne.s32.totalorder %s150, %s153
      %p162 = scmp.eq.s32.totalorder %s29, 1
      %p163 = por %p161, %p162
      %p164 = scmp.ne.s32.totalorder %s153, %s154
      %p165 = scmp.eq.s32.totalorder %s29, 0
      %p166 = por %p164, %p165
      %p167 = scmp.ne.s32.totalorder %s153, %s154
      %p168 = scmp.eq.s32.totalorder %s30, 1
      %p169 = por %p167, %p168
      %p171 = scmp.ne.s32.totalorder %s154, %s170
      %p172 = scmp.eq.s32.totalorder %s30, 0
      %p173 = por %p171, %p172
      %s174 = ssub.s32 %s32, %s39
      %p175 = scmp.eq.s32.totalorder %s174, 0
      %s177 = sadd.s32 %s176, 1
      %s178 = scalar_select %p175, %s176, %s177
      %p181 = pneg %p175
      %p182 = scmp.eq.s32.totalorder %s24, 1
      %p183 = por %p181, %p182
      %p184 = scmp.ne.s32.totalorder %s176, %s179
      %p185 = scmp.eq.s32.totalorder %s24, 0
      %p186 = por %p184, %p185
      %p187 = scmp.ne.s32.totalorder %s176, %s179
      %p188 = scmp.eq.s32.totalorder %s29, 1
      %p189 = por %p187, %p188
      %p190 = scmp.ne.s32.totalorder %s179, %s180
      %p191 = scmp.eq.s32.totalorder %s29, 0
      %p192 = por %p190, %p191
      %p193 = scmp.ne.s32.totalorder %s179, %s180
      %p194 = scmp.eq.s32.totalorder %s30, 1
      %p195 = por %p193, %p194
      %p197 = scmp.ne.s32.totalorder %s180, %s196
      %p198 = scmp.eq.s32.totalorder %s30, 0
      %p199 = por %p197, %p198
      %s201 = sadd.s32 %s200, 1
      %p204 = scmp.eq.s32.totalorder %s24, 1
      %p205 = scmp.ne.s32.totalorder %s200, %s202
      %p206 = scmp.eq.s32.totalorder %s24, 0
      %p207 = por %p205, %p206
      %p208 = scmp.ne.s32.totalorder %s200, %s202
      %p209 = scmp.eq.s32.totalorder %s29, 1
      %p210 = por %p208, %p209
      %p211 = scmp.ne.s32.totalorder %s202, %s203
      %p212 = scmp.eq.s32.totalorder %s29, 0
      %p213 = por %p211, %p212
      %p214 = scmp.ne.s32.totalorder %s202, %s203
      %p215 = scmp.eq.s32.totalorder %s30, 1
      %p216 = por %p214, %p215
      %p218 = scmp.ne.s32.totalorder %s203, %s217
      %p219 = scmp.eq.s32.totalorder %s30, 0
      %p220 = por %p218, %p219
      %s221 = ssub.s32 %s31, %s43
      %p222 = scmp.eq.s32.totalorder %s221, 0
      %s224 = sadd.s32 %s223, 1
      %s225 = scalar_select %p222, %s223, %s224
      %p228 = pneg %p222
      %p229 = scmp.eq.s32.totalorder %s24, 1
      %p230 = por %p228, %p229
      %p231 = scmp.ne.s32.totalorder %s223, %s226
      %p232 = scmp.eq.s32.totalorder %s24, 0
      %p233 = por %p231, %p232
      %p234 = scmp.ne.s32.totalorder %s223, %s226
      %p235 = scmp.eq.s32.totalorder %s29, 1
      %p236 = por %p234, %p235
      %p237 = scmp.ne.s32.totalorder %s226, %s227
      %p238 = scmp.eq.s32.totalorder %s29, 0
      %p239 = por %p237, %p238
      %p240 = scmp.ne.s32.totalorder %s226, %s227
      %p241 = scmp.eq.s32.totalorder %s30, 1
      %p242 = por %p240, %p241
      %p244 = scmp.ne.s32.totalorder %s227, %s243
      %p245 = scmp.eq.s32.totalorder %s30, 0
      %p246 = por %p244, %p245
      %p247 = scmp.le.s32.totalorder 1, %s24
      %p248 = scmp.lt.s32.totalorder %s24, 3
      %p249 = pnand %p247, %p248
      %p250 = pneg %p249
      // Predicated region
      $region9: #{mlp_forward.1} parent=5 // pred_check
        _
      $region10: #{mlp_forward.1} parent=5 // pred_check_branch
        %252 = sbr.rel (%p249) target = $region12
      $region11: #{mlp_forward.1} parent=5 // pred_region
        %s253 = ssub.s32 %s24, 1
        // Predicated region
        $region13: #{mlp_forward.1} parent=11 // pred_check
          %p254 = pneg %p62
        $region14: #{mlp_forward.1} parent=11 // pred_check_branch
          %256 = sbr.rel (%p254) target = $region16
        $region15: #{mlp_forward.1} parent=11 // pred_region
          %s257 = smul.u32 16, %s33
          %259 = vsyncadd [#allocation4], 0
          %s260 = smul.addr %s257, 8
          %s261 = scalar_lea.hbm %s0, %s260
          %s262 = sshll.u32 %s261, 4
          %s263 = int_to_ptr.hbm [resolvable:$true] %s262
          %s264 = sshll.u32 [#allocation3], 4
          %s265 = int_to_ptr.vmem [resolvable:$true] %s264
          %270 = dma.hbm_to_vmem [thread:$0]  %s263, 2048, %s265, [#allocation4], 128, 128, 8
        $region16: #{mlp_forward.1} parent=11 // pred_fallthru
          _
        // Predicated region
        $region17: #{mlp_forward.1} parent=11 // pred_check
          %p271 = pneg %p213
        $region18: #{mlp_forward.1} parent=11 // pred_check_branch
          %273 = sbr.rel (%p271) target = $region20
        $region19: #{mlp_forward.1} parent=11 // pred_region
          _
        $region20: #{mlp_forward.1} parent=11 // pred_fallthru
          _
      $region12: #{mlp_forward.1} parent=5 // pred_fallthru
        _
      %p274 = scmp.lt.s32.totalorder %s24, 2
      // Predicated region
      $region21: #{mlp_forward.1} parent=5 // pred_check
        %p275 = pneg %p274
      $region22: #{mlp_forward.1} parent=5 // pred_check_branch
        %277 = sbr.rel (%p275) target = $region24
      $region23: #{mlp_forward.1} parent=5 // pred_region
        // Predicated region
        $region25: #{mlp_forward.1} parent=23 // pred_check
          %p278 = pneg %p82
        $region26: #{mlp_forward.1} parent=23 // pred_check_branch
          %280 = sbr.rel (%p278) target = $region28
        $region27: #{mlp_forward.1} parent=23 // pred_region
          %s281 = sand.u32 %s24, 1
          %s282 = scalar_lea.sflag [#allocation7], %s281
          %s283 = sand.u32 %s72, 1
          %s284 = smul.addr %s283, 256
          %s285 = scalar_lea.vmem [#allocation6], %s284
          %s286 = smul.u32 2, %s32
          %288 = vsyncadd %s282, 0
          %s289 = smul.addr %s286, 8
          %s290 = scalar_lea.hbm %s1, %s289
          %s291 = sshll.u32 %s290, 4
          %s292 = int_to_ptr.hbm [resolvable:$true] %s291
          %s293 = sshll.u32 %s285, 4
          %s294 = int_to_ptr.vmem [resolvable:$true] %s293
          %299 = dma.hbm_to_vmem [thread:$0]  %s292, 4096, %s294, %s282, 512, 256, 16
        $region28: #{mlp_forward.1} parent=23 // pred_fallthru
          _
        // Predicated region
        $region29: #{mlp_forward.1} parent=23 // pred_check
          %p300 = pneg %p108
        $region30: #{mlp_forward.1} parent=23 // pred_check_branch
          %302 = sbr.rel (%p300) target = $region32
        $region31: #{mlp_forward.1} parent=23 // pred_region
          %s303 = sand.u32 %s24, 1
          %s304 = scalar_lea.sflag [#allocation7], %s303
          %s305 = sand.u32 %s98, 1
          %s306 = smul.addr %s305, 2
          %s307 = scalar_lea.vmem [#allocation8], %s306
          %s308 = smul.u32 2, %s32
          %310 = vsyncadd %s304, 0
          %s311 = scalar_lea.hbm %s2, %s308
          %s313 = sshll.u32 %s311, 4
          %s314 = int_to_ptr.hbm [resolvable:$true] %s313
          %s315 = sshll.u32 %s307, 4
          %s316 = int_to_ptr.vmem [resolvable:$true] %s315
          %318 = dma.hbm_to_vmem [thread:$0]  %s314, 32, %s316, %s304
        $region32: #{mlp_forward.1} parent=23 // pred_fallthru
          _
        // Predicated region
        $region33: #{mlp_forward.1} parent=23 // pred_check
          %p319 = pneg %p134
        $region34: #{mlp_forward.1} parent=23 // pred_check_branch
          %321 = sbr.rel (%p319) target = $region36
        $region35: #{mlp_forward.1} parent=23 // pred_region
          %s322 = sand.u32 %s24, 1
          %s323 = scalar_lea.sflag [#allocation10], %s322
          %s324 = sand.u32 %s124, 1
          %s325 = smul.addr %s324, 256
          %s326 = scalar_lea.vmem [#allocation9], %s325
          %s327 = smul.u32 2, %s32
          %329 = vsyncadd %s323, 0
          %s330 = smul.addr %s327, 8
          %s331 = scalar_lea.hbm %s3, %s330
          %s332 = sshll.u32 %s331, 4
          %s333 = int_to_ptr.hbm [resolvable:$true] %s332
          %s334 = sshll.u32 %s326, 4
          %s335 = int_to_ptr.vmem [resolvable:$true] %s334
          %340 = dma.hbm_to_vmem [thread:$0]  %s333, 4096, %s335, %s323, 512, 256, 16
        $region36: #{mlp_forward.1} parent=23 // pred_fallthru
          _
        // Predicated region
        $region37: #{mlp_forward.1} parent=23 // pred_check
          %p341 = pneg %p160
        $region38: #{mlp_forward.1} parent=23 // pred_check_branch
          %343 = sbr.rel (%p341) target = $region40
        $region39: #{mlp_forward.1} parent=23 // pred_region
          %s344 = sand.u32 %s24, 1
          %s345 = scalar_lea.sflag [#allocation10], %s344
          %s346 = sand.u32 %s150, 1
          %s347 = smul.addr %s346, 2
          %s348 = scalar_lea.vmem [#allocation11], %s347
          %s349 = smul.u32 2, %s32
          %351 = vsyncadd %s345, 0
          %s352 = scalar_lea.hbm %s4, %s349
          %s354 = sshll.u32 %s352, 4
          %s355 = int_to_ptr.hbm [resolvable:$true] %s354
          %s356 = sshll.u32 %s348, 4
          %s357 = int_to_ptr.vmem [resolvable:$true] %s356
          %359 = dma.hbm_to_vmem [thread:$0]  %s355, 32, %s357, %s345
        $region40: #{mlp_forward.1} parent=23 // pred_fallthru
          _
        // Predicated region
        $region41: #{mlp_forward.1} parent=23 // pred_check
          %p360 = pneg %p186
        $region42: #{mlp_forward.1} parent=23 // pred_check_branch
          %362 = sbr.rel (%p360) target = $region44
        $region43: #{mlp_forward.1} parent=23 // pred_region
          %s363 = sand.u32 %s176, 1
          %s364 = scalar_lea.sflag [#allocation13], %s363
          %s365 = sand.u32 %s176, 1
          %s366 = smul.addr %s365, 256
          %s367 = scalar_lea.vmem [#allocation12], %s366
          %s368 = smul.u32 32, %s32
          %370 = vsyncadd %s364, 0
          %s371 = smul.addr %s368, 8
          %s372 = scalar_lea.hbm %s5, %s371
          %s373 = sshll.u32 %s372, 4
          %s374 = int_to_ptr.hbm [resolvable:$true] %s373
          %s375 = sshll.u32 %s367, 4
          %s376 = int_to_ptr.vmem [resolvable:$true] %s375
          %381 = dma.hbm_to_vmem [thread:$0]  %s374, 4096, %s376, %s364, 128, 128, 8
        $region44: #{mlp_forward.1} parent=23 // pred_fallthru
          _
      $region24: #{mlp_forward.1} parent=5 // pred_fallthru
        _
      %p382 = scmp.le.s32.totalorder 1, %s24
      %p383 = scmp.lt.s32.totalorder %s24, 3
      %p384 = pnand %p382, %p383
      %p385 = pneg %p384
      // Predicated region
      $region45: #{mlp_forward.1} parent=5 // pred_check
        _
      $region46: #{mlp_forward.1} parent=5 // pred_check_branch
        %387 = sbr.rel (%p384) target = $region48
      $region47: #{mlp_forward.1} parent=5 // pred_region
        %s388 = ssub.s32 %s24, 1
        // Predicated region
        $region49: #{mlp_forward.1} parent=47 // pred_check
          %p389 = pneg %p62
        $region50: #{mlp_forward.1} parent=47 // pred_check_branch
          %391 = sbr.rel (%p389) target = $region52
        $region51: #{mlp_forward.1} parent=47 // pred_region
          %393 = dma.done [#allocation4], 2048
        $region52: #{mlp_forward.1} parent=47 // pred_fallthru
          _
        %s394 = sand.u32 %s29, 1
        %s395 = scalar_lea.sflag [#allocation7], %s394
        %s396 = sand.u32 %s75, 1
        %s397 = smul.addr %s396, 256
        %s398 = scalar_lea.vmem [#allocation6], %s397
        // Predicated region
        $region53: #{mlp_forward.1} parent=47 // pred_check
          %p399 = pneg %p88
        $region54: #{mlp_forward.1} parent=47 // pred_check_branch
          %401 = sbr.rel (%p399) target = $region56
        $region55: #{mlp_forward.1} parent=47 // pred_region
          %403 = dma.done %s395, 4096
        $region56: #{mlp_forward.1} parent=47 // pred_fallthru
          _
        %s404 = sand.u32 %s29, 1
        %s405 = scalar_lea.sflag [#allocation7], %s404
        %s406 = sand.u32 %s101, 1
        %s407 = smul.addr %s406, 2
        %s408 = scalar_lea.vmem [#allocation8], %s407
        // Predicated region
        $region57: #{mlp_forward.1} parent=47 // pred_check
          %p409 = pneg %p114
        $region58: #{mlp_forward.1} parent=47 // pred_check_branch
          %411 = sbr.rel (%p409) target = $region60
        $region59: #{mlp_forward.1} parent=47 // pred_region
          %413 = dma.done %s405, 32
        $region60: #{mlp_forward.1} parent=47 // pred_fallthru
          _
        %s414 = sand.u32 %s29, 1
        %s415 = scalar_lea.sflag [#allocation10], %s414
        %s416 = sand.u32 %s127, 1
        %s417 = smul.addr %s416, 256
        %s418 = scalar_lea.vmem [#allocation9], %s417
        // Predicated region
        $region61: #{mlp_forward.1} parent=47 // pred_check
          %p419 = pneg %p140
        $region62: #{mlp_forward.1} parent=47 // pred_check_branch
          %421 = sbr.rel (%p419) target = $region64
        $region63: #{mlp_forward.1} parent=47 // pred_region
          %423 = dma.done %s415, 4096
        $region64: #{mlp_forward.1} parent=47 // pred_fallthru
          _
        %s424 = sand.u32 %s29, 1
        %s425 = scalar_lea.sflag [#allocation10], %s424
        %s426 = sand.u32 %s153, 1
        %s427 = smul.addr %s426, 2
        %s428 = scalar_lea.vmem [#allocation11], %s427
        // Predicated region
        $region65: #{mlp_forward.1} parent=47 // pred_check
          %p429 = pneg %p166
        $region66: #{mlp_forward.1} parent=47 // pred_check_branch
          %431 = sbr.rel (%p429) target = $region68
        $region67: #{mlp_forward.1} parent=47 // pred_region
          %433 = dma.done %s425, 32
        $region68: #{mlp_forward.1} parent=47 // pred_fallthru
          _
        %s434 = sand.u32 %s179, 1
        %s435 = scalar_lea.sflag [#allocation13], %s434
        %s436 = sand.u32 %s179, 1
        %s437 = smul.addr %s436, 256
        %s438 = scalar_lea.vmem [#allocation12], %s437
        // Predicated region
        $region69: #{mlp_forward.1} parent=47 // pred_check
          %p439 = pneg %p192
        $region70: #{mlp_forward.1} parent=47 // pred_check_branch
          %441 = sbr.rel (%p439) target = $region72
        $region71: #{mlp_forward.1} parent=47 // pred_region
          %443 = dma.done %s435, 4096
        $region72: #{mlp_forward.1} parent=47 // pred_fallthru
          _
        %p444 = pneg %p62
        %p445 = pneg %p59
        %s446 = sand.u32 %s29, 1
        %s447 = scalar_lea.sflag [#allocation7], %s446
        %s448 = sand.u32 %s75, 1
        %s449 = smul.addr %s448, 256
        %s450 = scalar_lea.vmem [#allocation6], %s449
        %p451 = pneg %p88
        %p452 = pneg %p85
        %s453 = sand.u32 %s29, 1
        %s454 = scalar_lea.sflag [#allocation7], %s453
        %s455 = sand.u32 %s101, 1
        %s456 = smul.addr %s455, 2
        %s457 = scalar_lea.vmem [#allocation8], %s456
        %p458 = pneg %p114
        %p459 = pneg %p111
        %s460 = sand.u32 %s29, 1
        %s461 = scalar_lea.sflag [#allocation10], %s460
        %s462 = sand.u32 %s127, 1
        %s463 = smul.addr %s462, 256
        %s464 = scalar_lea.vmem [#allocation9], %s463
        %p465 = pneg %p140
        %p466 = pneg %p137
        %s467 = sand.u32 %s29, 1
        %s468 = scalar_lea.sflag [#allocation10], %s467
        %s469 = sand.u32 %s153, 1
        %s470 = smul.addr %s469, 2
        %s471 = scalar_lea.vmem [#allocation11], %s470
        %p472 = pneg %p166
        %p473 = pneg %p163
        %s474 = sand.u32 %s179, 1
        %s475 = scalar_lea.sflag [#allocation13], %s474
        %s476 = sand.u32 %s179, 1
        %s477 = smul.addr %s476, 256
        %s478 = scalar_lea.vmem [#allocation12], %s477
        %p479 = pneg %p192
        %p480 = pneg %p189
        %p481 = pneg %p213
        %p482 = pneg %p210
        %p483 = pneg %p239
        %p484 = pneg %p236
        %s485 = smul.u32 16, %s33
        %s486 = smul.u32 2, %s34
        %s487 = smul.u32 2, %s34
        %s488 = smul.u32 2, %s34
        %s489 = smul.u32 2, %s34
        %s490 = smul.u32 32, %s34
        %s491 = smul.u32 16, %s33
        %p492 = scmp.eq.s32.totalorder %s34, 0
        // Predicated region
        $region73: #{mlp_forward.1} parent=47 // pred_check
          %p493 = pneg %p492
        $region74: #{mlp_forward.1} parent=47 // pred_check_branch
          %495 = sbr.rel (%p493) target = $region76
        $region75: #{mlp_forward.1} parent=47 // pred_region
          %496 = vst [vmem:[#allocation2] sm:$0xff] 0.0
          %497 = vst [vmem:[#allocation2 + $0x8] sm:$0xff] 0.0
          %498 = vst [vmem:[#allocation2 + $0x10] sm:$0xff] 0.0
          %499 = vst [vmem:[#allocation2 + $0x18] sm:$0xff] 0.0
          %500 = vst [vmem:[#allocation2 + $0x20] sm:$0xff] 0.0
          %501 = vst [vmem:[#allocation2 + $0x28] sm:$0xff] 0.0
          %502 = vst [vmem:[#allocation2 + $0x30] sm:$0xff] 0.0
          %503 = vst [vmem:[#allocation2 + $0x38] sm:$0xff] 0.0
          %504 = vst [vmem:[#allocation2 + $0x40] sm:$0xff] 0.0
          %505 = vst [vmem:[#allocation2 + $0x48] sm:$0xff] 0.0
          %506 = vst [vmem:[#allocation2 + $0x50] sm:$0xff] 0.0
          %507 = vst [vmem:[#allocation2 + $0x58] sm:$0xff] 0.0
          %508 = vst [vmem:[#allocation2 + $0x60] sm:$0xff] 0.0
          %509 = vst [vmem:[#allocation2 + $0x68] sm:$0xff] 0.0
          %510 = vst [vmem:[#allocation2 + $0x70] sm:$0xff] 0.0
          %511 = vst [vmem:[#allocation2 + $0x78] sm:$0xff] 0.0
        $region76: #{mlp_forward.1} parent=47 // pred_fallthru
          _
        %v512 = vld [vmem:[#allocation3] sm:$0xff]
        %v513 = vld [vmem:[#allocation3 + $0x8] sm:$0xff]
        %v514 = vld [vmem:[#allocation3 + $0x10] sm:$0xff]
        %v515 = vld [vmem:[#allocation3 + $0x18] sm:$0xff]
        %v516 = vld [vmem:[#allocation3 + $0x20] sm:$0xff]
        %v517 = vld [vmem:[#allocation3 + $0x28] sm:$0xff]
        %v518 = vld [vmem:[#allocation3 + $0x30] sm:$0xff]
        %v519 = vld [vmem:[#allocation3 + $0x38] sm:$0xff]
        %v520 = vld [vmem:[#allocation3 + $0x40] sm:$0xff]
        %v521 = vld [vmem:[#allocation3 + $0x48] sm:$0xff]
        %v522 = vld [vmem:[#allocation3 + $0x50] sm:$0xff]
        %v523 = vld [vmem:[#allocation3 + $0x58] sm:$0xff]
        %v524 = vld [vmem:[#allocation3 + $0x60] sm:$0xff]
        %v525 = vld [vmem:[#allocation3 + $0x68] sm:$0xff]
        %v526 = vld [vmem:[#allocation3 + $0x70] sm:$0xff]
        %v527 = vld [vmem:[#allocation3 + $0x78] sm:$0xff]
        %v528 = vld [vmem:[%s398] sm:$0xff]
        %v529 = vld [vmem:[%s398 + $0x8] sm:$0xff]
        %v530 = vld [vmem:[%s398 + $0x10] sm:$0xff]
        %v531 = vld [vmem:[%s398 + $0x18] sm:$0xff]
        %v532 = vld [vmem:[%s398 + $0x20] sm:$0xff]
        %v533 = vld [vmem:[%s398 + $0x28] sm:$0xff]
        %v534 = vld [vmem:[%s398 + $0x30] sm:$0xff]
        %v535 = vld [vmem:[%s398 + $0x38] sm:$0xff]
        %v536 = vld [vmem:[%s398 + $0x40] sm:$0xff]
        %v537 = vld [vmem:[%s398 + $0x48] sm:$0xff]
        %v538 = vld [vmem:[%s398 + $0x50] sm:$0xff]
        %v539 = vld [vmem:[%s398 + $0x58] sm:$0xff]
        %v540 = vld [vmem:[%s398 + $0x60] sm:$0xff]
        %v541 = vld [vmem:[%s398 + $0x68] sm:$0xff]
        %v542 = vld [vmem:[%s398 + $0x70] sm:$0xff]
        %v543 = vld [vmem:[%s398 + $0x78] sm:$0xff]
        %v544 = vld [vmem:[%s398 + $0x80] sm:$0xff]
        %v545 = vld [vmem:[%s398 + $0x88] sm:$0xff]
        %v546 = vld [vmem:[%s398 + $0x90] sm:$0xff]
        %v547 = vld [vmem:[%s398 + $0x98] sm:$0xff]
        %v548 = vld [vmem:[%s398 + $0xa0] sm:$0xff]
        %v549 = vld [vmem:[%s398 + $0xa8] sm:$0xff]
        %v550 = vld [vmem:[%s398 + $0xb0] sm:$0xff]
        %v551 = vld [vmem:[%s398 + $0xb8] sm:$0xff]
        %v552 = vld [vmem:[%s398 + $0xc0] sm:$0xff]
        %v553 = vld [vmem:[%s398 + $0xc8] sm:$0xff]
        %v554 = vld [vmem:[%s398 + $0xd0] sm:$0xff]
        %v555 = vld [vmem:[%s398 + $0xd8] sm:$0xff]
        %v556 = vld [vmem:[%s398 + $0xe0] sm:$0xff]
        %v557 = vld [vmem:[%s398 + $0xe8] sm:$0xff]
        %v558 = vld [vmem:[%s398 + $0xf0] sm:$0xff]
        %v559 = vld [vmem:[%s398 + $0xf8] sm:$0xff]
        %v560 = vld [vmem:[%s408] sm:$0x3]
        %v562 = vperm.slane %v560, 0
        %v563 = vperm.slane %v560, 1
        %566 = vmatpush.msra.mxu0 %v558
        %567 = vmatpush.msra.mxu0 %v556
        %568 = vmatpush.msra.mxu0 %v554
        %569 = vmatpush.msra.mxu0 %v552
        %570 = vmatpush.msra.mxu0 %v550
        %571 = vmatpush.msra.mxu0 %v548
        %572 = vmatpush.msra.mxu0 %v546
        %573 = vmatpush.msra.mxu0 %v544
        %574 = vmatpush.msra.mxu0 %v542
        %575 = vmatpush.msra.mxu0 %v540
        %576 = vmatpush.msra.mxu0 %v538
        %577 = vmatpush.msra.mxu0 %v536
        %578 = vmatpush.msra.mxu0 %v534
        %579 = vmatpush.msra.mxu0 %v532
        %580 = vmatpush.msra.mxu0 %v530
        %581 = vmatpush.msra.mxu0 %v528
        %582 = vmatmul.f32.gmra.mxu0 %v512
        %v583 = vpop.f32.mrf.mxu0
        %v584 = vadd.f32 %v562, %v583
        %585 = vmatmul.f32.gmra.mxu0 %v513
        %v586 = vpop.f32.mrf.mxu0
        %v587 = vadd.f32 %v562, %v586
        %588 = vmatmul.f32.gmra.mxu0 %v514
        %v589 = vpop.f32.mrf.mxu0
        %v590 = vadd.f32 %v562, %v589
        %591 = vmatmul.f32.gmra.mxu0 %v515
        %v592 = vpop.f32.mrf.mxu0
        %v593 = vadd.f32 %v562, %v592
        %594 = vmatmul.f32.gmra.mxu0 %v516
        %v595 = vpop.f32.mrf.mxu0
        %v596 = vadd.f32 %v562, %v595
        %597 = vmatmul.f32.gmra.mxu0 %v517
        %v598 = vpop.f32.mrf.mxu0
        %v599 = vadd.f32 %v562, %v598
        %600 = vmatmul.f32.gmra.mxu0 %v518
        %v601 = vpop.f32.mrf.mxu0
        %v602 = vadd.f32 %v562, %v601
        %603 = vmatmul.f32.gmra.mxu0 %v519
        %v604 = vpop.f32.mrf.mxu0
        %v605 = vadd.f32 %v562, %v604
        %606 = vmatmul.f32.gmra.mxu0 %v520
        %v607 = vpop.f32.mrf.mxu0
        %v608 = vadd.f32 %v562, %v607
        %609 = vmatmul.f32.gmra.mxu0 %v521
        %v610 = vpop.f32.mrf.mxu0
        %v611 = vadd.f32 %v562, %v610
        %612 = vmatmul.f32.gmra.mxu0 %v522
        %v613 = vpop.f32.mrf.mxu0
        %v614 = vadd.f32 %v562, %v613
        %615 = vmatmul.f32.gmra.mxu0 %v523
        %v616 = vpop.f32.mrf.mxu0
        %v617 = vadd.f32 %v562, %v616
        %618 = vmatmul.f32.gmra.mxu0 %v524
        %v619 = vpop.f32.mrf.mxu0
        %v620 = vadd.f32 %v562, %v619
        %621 = vmatmul.f32.gmra.mxu0 %v525
        %v622 = vpop.f32.mrf.mxu0
        %v623 = vadd.f32 %v562, %v622
        %624 = vmatmul.f32.gmra.mxu0 %v526
        %v625 = vpop.f32.mrf.mxu0
        %v626 = vadd.f32 %v562, %v625
        %627 = vmatmul.f32.gmra.mxu0 %v527
        %v628 = vpop.f32.mrf.mxu0
        %v629 = vadd.f32 %v562, %v628
        %630 = vdwg.mxu0
        %631 = vmatpush.msra.mxu0 %v559
        %632 = vmatpush.msra.mxu0 %v557
        %633 = vmatpush.msra.mxu0 %v555
        %634 = vmatpush.msra.mxu0 %v553
        %635 = vmatpush.msra.mxu0 %v551
        %636 = vmatpush.msra.mxu0 %v549
        %637 = vmatpush.msra.mxu0 %v547
        %638 = vmatpush.msra.mxu0 %v545
        %639 = vmatpush.msra.mxu0 %v543
        %640 = vmatpush.msra.mxu0 %v541
        %641 = vmatpush.msra.mxu0 %v539
        %642 = vmatpush.msra.mxu0 %v537
        %643 = vmatpush.msra.mxu0 %v535
        %644 = vmatpush.msra.mxu0 %v533
        %645 = vmatpush.msra.mxu0 %v531
        %646 = vmatpush.msra.mxu0 %v529
        %647 = vmatmul.f32.gmra.mxu0 %v512
        %v648 = vpop.f32.mrf.mxu0
        %v649 = vadd.f32 %v563, %v648
        %650 = vmatmul.f32.gmra.mxu0 %v513
        %v651 = vpop.f32.mrf.mxu0
        %v652 = vadd.f32 %v563, %v651
        %653 = vmatmul.f32.gmra.mxu0 %v514
        %v654 = vpop.f32.mrf.mxu0
        %v655 = vadd.f32 %v563, %v654
        %656 = vmatmul.f32.gmra.mxu0 %v515
        %v657 = vpop.f32.mrf.mxu0
        %v658 = vadd.f32 %v563, %v657
        %659 = vmatmul.f32.gmra.mxu0 %v516
        %v660 = vpop.f32.mrf.mxu0
        %v661 = vadd.f32 %v563, %v660
        %662 = vmatmul.f32.gmra.mxu0 %v517
        %v663 = vpop.f32.mrf.mxu0
        %v664 = vadd.f32 %v563, %v663
        %665 = vmatmul.f32.gmra.mxu0 %v518
        %v666 = vpop.f32.mrf.mxu0
        %v667 = vadd.f32 %v563, %v666
        %668 = vmatmul.f32.gmra.mxu0 %v519
        %v669 = vpop.f32.mrf.mxu0
        %v670 = vadd.f32 %v563, %v669
        %671 = vmatmul.f32.gmra.mxu0 %v520
        %v672 = vpop.f32.mrf.mxu0
        %v673 = vadd.f32 %v563, %v672
        %674 = vmatmul.f32.gmra.mxu0 %v521
        %v675 = vpop.f32.mrf.mxu0
        %v676 = vadd.f32 %v563, %v675
        %677 = vmatmul.f32.gmra.mxu0 %v522
        %v678 = vpop.f32.mrf.mxu0
        %v679 = vadd.f32 %v563, %v678
        %680 = vmatmul.f32.gmra.mxu0 %v523
        %v681 = vpop.f32.mrf.mxu0
        %v682 = vadd.f32 %v563, %v681
        %683 = vmatmul.f32.gmra.mxu0 %v524
        %v684 = vpop.f32.mrf.mxu0
        %v685 = vadd.f32 %v563, %v684
        %686 = vmatmul.f32.gmra.mxu0 %v525
        %v687 = vpop.f32.mrf.mxu0
        %v688 = vadd.f32 %v563, %v687
        %689 = vmatmul.f32.gmra.mxu0 %v526
        %v690 = vpop.f32.mrf.mxu0
        %v691 = vadd.f32 %v563, %v690
        %692 = vmatmul.f32.gmra.mxu0 %v527
        %v693 = vpop.f32.mrf.mxu0
        %v694 = vadd.f32 %v563, %v693
        %695 = vdwg.mxu0
        %v696 = vld [vmem:[%s418] sm:$0xff]
        %v697 = vld [vmem:[%s418 + $0x8] sm:$0xff]
        %v698 = vld [vmem:[%s418 + $0x10] sm:$0xff]
        %v699 = vld [vmem:[%s418 + $0x18] sm:$0xff]
        %v700 = vld [vmem:[%s418 + $0x20] sm:$0xff]
        %v701 = vld [vmem:[%s418 + $0x28] sm:$0xff]
        %v702 = vld [vmem:[%s418 + $0x30] sm:$0xff]
        %v703 = vld [vmem:[%s418 + $0x38] sm:$0xff]
        %v704 = vld [vmem:[%s418 + $0x40] sm:$0xff]
        %v705 = vld [vmem:[%s418 + $0x48] sm:$0xff]
        %v706 = vld [vmem:[%s418 + $0x50] sm:$0xff]
        %v707 = vld [vmem:[%s418 + $0x58] sm:$0xff]
        %v708 = vld [vmem:[%s418 + $0x60] sm:$0xff]
        %v709 = vld [vmem:[%s418 + $0x68] sm:$0xff]
        %v710 = vld [vmem:[%s418 + $0x70] sm:$0xff]
        %v711 = vld [vmem:[%s418 + $0x78] sm:$0xff]
        %v712 = vld [vmem:[%s418 + $0x80] sm:$0xff]
        %v713 = vld [vmem:[%s418 + $0x88] sm:$0xff]
        %v714 = vld [vmem:[%s418 + $0x90] sm:$0xff]
        %v715 = vld [vmem:[%s418 + $0x98] sm:$0xff]
        %v716 = vld [vmem:[%s418 + $0xa0] sm:$0xff]
        %v717 = vld [vmem:[%s418 + $0xa8] sm:$0xff]
        %v718 = vld [vmem:[%s418 + $0xb0] sm:$0xff]
        %v719 = vld [vmem:[%s418 + $0xb8] sm:$0xff]
        %v720 = vld [vmem:[%s418 + $0xc0] sm:$0xff]
        %v721 = vld [vmem:[%s418 + $0xc8] sm:$0xff]
        %v722 = vld [vmem:[%s418 + $0xd0] sm:$0xff]
        %v723 = vld [vmem:[%s418 + $0xd8] sm:$0xff]
        %v724 = vld [vmem:[%s418 + $0xe0] sm:$0xff]
        %v725 = vld [vmem:[%s418 + $0xe8] sm:$0xff]
        %v726 = vld [vmem:[%s418 + $0xf0] sm:$0xff]
        %v727 = vld [vmem:[%s418 + $0xf8] sm:$0xff]
        %v728 = vld [vmem:[%s428] sm:$0x3]
        %v730 = vperm.slane %v728, 0
        %v731 = vperm.slane %v728, 1
        %734 = vmatpush.msra.mxu0 %v726
        %735 = vmatpush.msra.mxu0 %v724
        %736 = vmatpush.msra.mxu0 %v722
        %737 = vmatpush.msra.mxu0 %v720
        %738 = vmatpush.msra.mxu0 %v718
        %739 = vmatpush.msra.mxu0 %v716
        %740 = vmatpush.msra.mxu0 %v714
        %741 = vmatpush.msra.mxu0 %v712
        %742 = vmatpush.msra.mxu0 %v710
        %743 = vmatpush.msra.mxu0 %v708
        %744 = vmatpush.msra.mxu0 %v706
        %745 = vmatpush.msra.mxu0 %v704
        %746 = vmatpush.msra.mxu0 %v702
        %747 = vmatpush.msra.mxu0 %v700
        %748 = vmatpush.msra.mxu0 %v698
        %749 = vmatpush.msra.mxu0 %v696
        %750 = vmatmul.f32.gmra.mxu0 %v512
        %v751 = vpop.f32.mrf.mxu0
        %v752 = vadd.f32 %v730, %v751
        %753 = vmatmul.f32.gmra.mxu0 %v513
        %v754 = vpop.f32.mrf.mxu0
        %v755 = vadd.f32 %v730, %v754
        %756 = vmatmul.f32.gmra.mxu0 %v514
        %v757 = vpop.f32.mrf.mxu0
        %v758 = vadd.f32 %v730, %v757
        %759 = vmatmul.f32.gmra.mxu0 %v515
        %v760 = vpop.f32.mrf.mxu0
        %v761 = vadd.f32 %v730, %v760
        %762 = vmatmul.f32.gmra.mxu0 %v516
        %v763 = vpop.f32.mrf.mxu0
        %v764 = vadd.f32 %v730, %v763
        %765 = vmatmul.f32.gmra.mxu0 %v517
        %v766 = vpop.f32.mrf.mxu0
        %v767 = vadd.f32 %v730, %v766
        %768 = vmatmul.f32.gmra.mxu0 %v518
        %v769 = vpop.f32.mrf.mxu0
        %v770 = vadd.f32 %v730, %v769
        %771 = vmatmul.f32.gmra.mxu0 %v519
        %v772 = vpop.f32.mrf.mxu0
        %v773 = vadd.f32 %v730, %v772
        %774 = vmatmul.f32.gmra.mxu0 %v520
        %v775 = vpop.f32.mrf.mxu0
        %v776 = vadd.f32 %v730, %v775
        %777 = vmatmul.f32.gmra.mxu0 %v521
        %v778 = vpop.f32.mrf.mxu0
        %v779 = vadd.f32 %v730, %v778
        %780 = vmatmul.f32.gmra.mxu0 %v522
        %v781 = vpop.f32.mrf.mxu0
        %v782 = vadd.f32 %v730, %v781
        %783 = vmatmul.f32.gmra.mxu0 %v523
        %v784 = vpop.f32.mrf.mxu0
        %v785 = vadd.f32 %v730, %v784
        %786 = vmatmul.f32.gmra.mxu0 %v524
        %v787 = vpop.f32.mrf.mxu0
        %v788 = vadd.f32 %v730, %v787
        %789 = vmatmul.f32.gmra.mxu0 %v525
        %v790 = vpop.f32.mrf.mxu0
        %v791 = vadd.f32 %v730, %v790
        %792 = vmatmul.f32.gmra.mxu0 %v526
        %v793 = vpop.f32.mrf.mxu0
        %v794 = vadd.f32 %v730, %v793
        %795 = vmatmul.f32.gmra.mxu0 %v527
        %v796 = vpop.f32.mrf.mxu0
        %v797 = vadd.f32 %v730, %v796
        %798 = vdwg.mxu0
        %799 = vmatpush.msra.mxu0 %v727
        %800 = vmatpush.msra.mxu0 %v725
        %801 = vmatpush.msra.mxu0 %v723
        %802 = vmatpush.msra.mxu0 %v721
        %803 = vmatpush.msra.mxu0 %v719
        %804 = vmatpush.msra.mxu0 %v717
        %805 = vmatpush.msra.mxu0 %v715
        %806 = vmatpush.msra.mxu0 %v713
        %807 = vmatpush.msra.mxu0 %v711
        %808 = vmatpush.msra.mxu0 %v709
        %809 = vmatpush.msra.mxu0 %v707
        %810 = vmatpush.msra.mxu0 %v705
        %811 = vmatpush.msra.mxu0 %v703
        %812 = vmatpush.msra.mxu0 %v701
        %813 = vmatpush.msra.mxu0 %v699
        %814 = vmatpush.msra.mxu0 %v697
        %815 = vmatmul.f32.gmra.mxu0 %v512
        %v816 = vpop.f32.mrf.mxu0
        %v817 = vadd.f32 %v731, %v816
        %818 = vmatmul.f32.gmra.mxu0 %v513
        %v819 = vpop.f32.mrf.mxu0
        %v820 = vadd.f32 %v731, %v819
        %821 = vmatmul.f32.gmra.mxu0 %v514
        %v822 = vpop.f32.mrf.mxu0
        %v823 = vadd.f32 %v731, %v822
        %824 = vmatmul.f32.gmra.mxu0 %v515
        %v825 = vpop.f32.mrf.mxu0
        %v826 = vadd.f32 %v731, %v825
        %827 = vmatmul.f32.gmra.mxu0 %v516
        %v828 = vpop.f32.mrf.mxu0
        %v829 = vadd.f32 %v731, %v828
        %830 = vmatmul.f32.gmra.mxu0 %v517
        %v831 = vpop.f32.mrf.mxu0
        %v832 = vadd.f32 %v731, %v831
        %833 = vmatmul.f32.gmra.mxu0 %v518
        %v834 = vpop.f32.mrf.mxu0
        %v835 = vadd.f32 %v731, %v834
        %836 = vmatmul.f32.gmra.mxu0 %v519
        %v837 = vpop.f32.mrf.mxu0
        %v838 = vadd.f32 %v731, %v837
        %839 = vmatmul.f32.gmra.mxu0 %v520
        %v840 = vpop.f32.mrf.mxu0
        %v841 = vadd.f32 %v731, %v840
        %842 = vmatmul.f32.gmra.mxu0 %v521
        %v843 = vpop.f32.mrf.mxu0
        %v844 = vadd.f32 %v731, %v843
        %845 = vmatmul.f32.gmra.mxu0 %v522
        %v846 = vpop.f32.mrf.mxu0
        %v847 = vadd.f32 %v731, %v846
        %848 = vmatmul.f32.gmra.mxu0 %v523
        %v849 = vpop.f32.mrf.mxu0
        %v850 = vadd.f32 %v731, %v849
        %851 = vmatmul.f32.gmra.mxu0 %v524
        %v852 = vpop.f32.mrf.mxu0
        %v853 = vadd.f32 %v731, %v852
        %854 = vmatmul.f32.gmra.mxu0 %v525
        %v855 = vpop.f32.mrf.mxu0
        %v856 = vadd.f32 %v731, %v855
        %857 = vmatmul.f32.gmra.mxu0 %v526
        %v858 = vpop.f32.mrf.mxu0
        %v859 = vadd.f32 %v731, %v858
        %860 = vmatmul.f32.gmra.mxu0 %v527
        %v861 = vpop.f32.mrf.mxu0
        %v862 = vadd.f32 %v731, %v861
        %863 = vdwg.mxu0
        %v864 = vxor.u32 %v584, 2147483648
        %v865 = vxor.u32 %v649, 2147483648
        %v866 = vxor.u32 %v587, 2147483648
        %v867 = vxor.u32 %v652, 2147483648
        %v868 = vxor.u32 %v590, 2147483648
        %v869 = vxor.u32 %v655, 2147483648
        %v870 = vxor.u32 %v593, 2147483648
        %v871 = vxor.u32 %v658, 2147483648
        %v872 = vxor.u32 %v596, 2147483648
        %v873 = vxor.u32 %v661, 2147483648
        %v874 = vxor.u32 %v599, 2147483648
        %v875 = vxor.u32 %v664, 2147483648
        %v876 = vxor.u32 %v602, 2147483648
        %v877 = vxor.u32 %v667, 2147483648
        %v878 = vxor.u32 %v605, 2147483648
        %v879 = vxor.u32 %v670, 2147483648
        %v880 = vxor.u32 %v608, 2147483648
        %v881 = vxor.u32 %v673, 2147483648
        %v882 = vxor.u32 %v611, 2147483648
        %v883 = vxor.u32 %v676, 2147483648
        %v884 = vxor.u32 %v614, 2147483648
        %v885 = vxor.u32 %v679, 2147483648
        %v886 = vxor.u32 %v617, 2147483648
        %v887 = vxor.u32 %v682, 2147483648
        %v888 = vxor.u32 %v620, 2147483648
        %v889 = vxor.u32 %v685, 2147483648
        %v890 = vxor.u32 %v623, 2147483648
        %v891 = vxor.u32 %v688, 2147483648
        %v892 = vxor.u32 %v626, 2147483648
        %v893 = vxor.u32 %v691, 2147483648
        %v894 = vxor.u32 %v629, 2147483648
        %v895 = vxor.u32 %v694, 2147483648
        %v896 = vmul.f32 %v864, 1.442695
        %v897 = vpow.pop %v896
        %v898 = vmul.f32 %v865, 1.442695
        %v899 = vpow.pop %v898
        %v900 = vmul.f32 %v866, 1.442695
        %v901 = vpow.pop %v900
        %v902 = vmul.f32 %v867, 1.442695
        %v903 = vpow.pop %v902
        %v904 = vmul.f32 %v868, 1.442695
        %v905 = vpow.pop %v904
        %v906 = vmul.f32 %v869, 1.442695
        %v907 = vpow.pop %v906
        %v908 = vmul.f32 %v870, 1.442695
        %v909 = vpow.pop %v908
        %v910 = vmul.f32 %v871, 1.442695
        %v911 = vpow.pop %v910
        %v912 = vmul.f32 %v872, 1.442695
        %v913 = vpow.pop %v912
        %v914 = vmul.f32 %v873, 1.442695
        %v915 = vpow.pop %v914
        %v916 = vmul.f32 %v874, 1.442695
        %v917 = vpow.pop %v916
        %v918 = vmul.f32 %v875, 1.442695
        %v919 = vpow.pop %v918
        %v920 = vmul.f32 %v876, 1.442695
        %v921 = vpow.pop %v920
        %v922 = vmul.f32 %v877, 1.442695
        %v923 = vpow.pop %v922
        %v924 = vmul.f32 %v878, 1.442695
        %v925 = vpow.pop %v924
        %v926 = vmul.f32 %v879, 1.442695
        %v927 = vpow.pop %v926
        %v928 = vmul.f32 %v880, 1.442695
        %v929 = vpow.pop %v928
        %v930 = vmul.f32 %v881, 1.442695
        %v931 = vpow.pop %v930
        %v932 = vmul.f32 %v882, 1.442695
        %v933 = vpow.pop %v932
        %v934 = vmul.f32 %v883, 1.442695
        %v935 = vpow.pop %v934
        %v936 = vmul.f32 %v884, 1.442695
        %v937 = vpow.pop %v936
        %v938 = vmul.f32 %v885, 1.442695
        %v939 = vpow.pop %v938
        %v940 = vmul.f32 %v886, 1.442695
        %v941 = vpow.pop %v940
        %v942 = vmul.f32 %v887, 1.442695
        %v943 = vpow.pop %v942
        %v944 = vmul.f32 %v888, 1.442695
        %v945 = vpow.pop %v944
        %v946 = vmul.f32 %v889, 1.442695
        %v947 = vpow.pop %v946
        %v948 = vmul.f32 %v890, 1.442695
        %v949 = vpow.pop %v948
        %v950 = vmul.f32 %v891, 1.442695
        %v951 = vpow.pop %v950
        %v952 = vmul.f32 %v892, 1.442695
        %v953 = vpow.pop %v952
        %v954 = vmul.f32 %v893, 1.442695
        %v955 = vpow.pop %v954
        %v956 = vmul.f32 %v894, 1.442695
        %v957 = vpow.pop %v956
        %v958 = vmul.f32 %v895, 1.442695
        %v959 = vpow.pop %v958
        %v960 = vadd.f32 %v897, 1.0
        %v961 = vadd.f32 %v899, 1.0
        %v962 = vadd.f32 %v901, 1.0
        %v963 = vadd.f32 %v903, 1.0
        %v964 = vadd.f32 %v905, 1.0
        %v965 = vadd.f32 %v907, 1.0
        %v966 = vadd.f32 %v909, 1.0
        %v967 = vadd.f32 %v911, 1.0
        %v968 = vadd.f32 %v913, 1.0
        %v969 = vadd.f32 %v915, 1.0
        %v970 = vadd.f32 %v917, 1.0
        %v971 = vadd.f32 %v919, 1.0
        %v972 = vadd.f32 %v921, 1.0
        %v973 = vadd.f32 %v923, 1.0
        %v974 = vadd.f32 %v925, 1.0
        %v975 = vadd.f32 %v927, 1.0
        %v976 = vadd.f32 %v929, 1.0
        %v977 = vadd.f32 %v931, 1.0
        %v978 = vadd.f32 %v933, 1.0
        %v979 = vadd.f32 %v935, 1.0
        %v980 = vadd.f32 %v937, 1.0
        %v981 = vadd.f32 %v939, 1.0
        %v982 = vadd.f32 %v941, 1.0
        %v983 = vadd.f32 %v943, 1.0
        %v984 = vadd.f32 %v945, 1.0
        %v985 = vadd.f32 %v947, 1.0
        %v986 = vadd.f32 %v949, 1.0
        %v987 = vadd.f32 %v951, 1.0
        %v988 = vadd.f32 %v953, 1.0
        %v989 = vadd.f32 %v955, 1.0
        %v990 = vadd.f32 %v957, 1.0
        %v991 = vadd.f32 %v959, 1.0
        %v992 = vrcp.pop %v960
        %v993 = vmul.f32 %v960, %v992
        %v994 = vsub.f32 1.0, %v993
        %v995 = vmul.f32 %v992, %v994
        %v996 = vadd.f32 %v992, %v995
        %vm997 = vweird.f32 %v960
        %vm998 = vweird.f32 %v992
        %vm999 = vmor %vm997, %vm998
        %v1000 = vsel %vm999, %v992, %v996
        %v1001 = vand.u32 2147483647, %v960
        %vm1002 = vcmp.eq.f32.partialorder %v1001, 8.507059e+37
        %v1003 = vand.u32 %v960, 2147483648
        %v1004 = vor.u32 1.1754944e-38, %v1003
        %v1005 = vsel %vm1002, %v1004, %v1000
        %v1006 = vmul.f32 1.0, %v1005
        %v1007 = vrcp.pop %v961
        %v1008 = vmul.f32 %v961, %v1007
        %v1009 = vsub.f32 1.0, %v1008
        %v1010 = vmul.f32 %v1007, %v1009
        %v1011 = vadd.f32 %v1007, %v1010
        %vm1012 = vweird.f32 %v961
        %vm1013 = vweird.f32 %v1007
        %vm1014 = vmor %vm1012, %vm1013
        %v1015 = vsel %vm1014, %v1007, %v1011
        %v1016 = vand.u32 2147483647, %v961
        %vm1017 = vcmp.eq.f32.partialorder %v1016, 8.507059e+37
        %v1018 = vand.u32 %v961, 2147483648
        %v1019 = vor.u32 1.1754944e-38, %v1018
        %v1020 = vsel %vm1017, %v1019, %v1015
        %v1021 = vmul.f32 1.0, %v1020
        %v1022 = vrcp.pop %v962
        %v1023 = vmul.f32 %v962, %v1022
        %v1024 = vsub.f32 1.0, %v1023
        %v1025 = vmul.f32 %v1022, %v1024
        %v1026 = vadd.f32 %v1022, %v1025
        %vm1027 = vweird.f32 %v962
        %vm1028 = vweird.f32 %v1022
        %vm1029 = vmor %vm1027, %vm1028
        %v1030 = vsel %vm1029, %v1022, %v1026
        %v1031 = vand.u32 2147483647, %v962
        %vm1032 = vcmp.eq.f32.partialorder %v1031, 8.507059e+37
        %v1033 = vand.u32 %v962, 2147483648
        %v1034 = vor.u32 1.1754944e-38, %v1033
        %v1035 = vsel %vm1032, %v1034, %v1030
        %v1036 = vmul.f32 1.0, %v1035
        %v1037 = vrcp.pop %v963
        %v1038 = vmul.f32 %v963, %v1037
        %v1039 = vsub.f32 1.0, %v1038
        %v1040 = vmul.f32 %v1037, %v1039
        %v1041 = vadd.f32 %v1037, %v1040
        %vm1042 = vweird.f32 %v963
        %vm1043 = vweird.f32 %v1037
        %vm1044 = vmor %vm1042, %vm1043
        %v1045 = vsel %vm1044, %v1037, %v1041
        %v1046 = vand.u32 2147483647, %v963
        %vm1047 = vcmp.eq.f32.partialorder %v1046, 8.507059e+37
        %v1048 = vand.u32 %v963, 2147483648
        %v1049 = vor.u32 1.1754944e-38, %v1048
        %v1050 = vsel %vm1047, %v1049, %v1045
        %v1051 = vmul.f32 1.0, %v1050
        %v1052 = vrcp.pop %v964
        %v1053 = vmul.f32 %v964, %v1052
        %v1054 = vsub.f32 1.0, %v1053
        %v1055 = vmul.f32 %v1052, %v1054
        %v1056 = vadd.f32 %v1052, %v1055
        %vm1057 = vweird.f32 %v964
        %vm1058 = vweird.f32 %v1052
        %vm1059 = vmor %vm1057, %vm1058
        %v1060 = vsel %vm1059, %v1052, %v1056
        %v1061 = vand.u32 2147483647, %v964
        %vm1062 = vcmp.eq.f32.partialorder %v1061, 8.507059e+37
        %v1063 = vand.u32 %v964, 2147483648
        %v1064 = vor.u32 1.1754944e-38, %v1063
        %v1065 = vsel %vm1062, %v1064, %v1060
        %v1066 = vmul.f32 1.0, %v1065
        %v1067 = vrcp.pop %v965
        %v1068 = vmul.f32 %v965, %v1067
        %v1069 = vsub.f32 1.0, %v1068
        %v1070 = vmul.f32 %v1067, %v1069
        %v1071 = vadd.f32 %v1067, %v1070
        %vm1072 = vweird.f32 %v965
        %vm1073 = vweird.f32 %v1067
        %vm1074 = vmor %vm1072, %vm1073
        %v1075 = vsel %vm1074, %v1067, %v1071
        %v1076 = vand.u32 2147483647, %v965
        %vm1077 = vcmp.eq.f32.partialorder %v1076, 8.507059e+37
        %v1078 = vand.u32 %v965, 2147483648
        %v1079 = vor.u32 1.1754944e-38, %v1078
        %v1080 = vsel %vm1077, %v1079, %v1075
        %v1081 = vmul.f32 1.0, %v1080
        %v1082 = vrcp.pop %v966
        %v1083 = vmul.f32 %v966, %v1082
        %v1084 = vsub.f32 1.0, %v1083
        %v1085 = vmul.f32 %v1082, %v1084
        %v1086 = vadd.f32 %v1082, %v1085
        %vm1087 = vweird.f32 %v966
        %vm1088 = vweird.f32 %v1082
        %vm1089 = vmor %vm1087, %vm1088
        %v1090 = vsel %vm1089, %v1082, %v1086
        %v1091 = vand.u32 2147483647, %v966
        %vm1092 = vcmp.eq.f32.partialorder %v1091, 8.507059e+37
        %v1093 = vand.u32 %v966, 2147483648
        %v1094 = vor.u32 1.1754944e-38, %v1093
        %v1095 = vsel %vm1092, %v1094, %v1090
        %v1096 = vmul.f32 1.0, %v1095
        %v1097 = vrcp.pop %v967
        %v1098 = vmul.f32 %v967, %v1097
        %v1099 = vsub.f32 1.0, %v1098
        %v1100 = vmul.f32 %v1097, %v1099
        %v1101 = vadd.f32 %v1097, %v1100
        %vm1102 = vweird.f32 %v967
        %vm1103 = vweird.f32 %v1097
        %vm1104 = vmor %vm1102, %vm1103
        %v1105 = vsel %vm1104, %v1097, %v1101
        %v1106 = vand.u32 2147483647, %v967
        %vm1107 = vcmp.eq.f32.partialorder %v1106, 8.507059e+37
        %v1108 = vand.u32 %v967, 2147483648
        %v1109 = vor.u32 1.1754944e-38, %v1108
        %v1110 = vsel %vm1107, %v1109, %v1105
        %v1111 = vmul.f32 1.0, %v1110
        %v1112 = vrcp.pop %v968
        %v1113 = vmul.f32 %v968, %v1112
        %v1114 = vsub.f32 1.0, %v1113
        %v1115 = vmul.f32 %v1112, %v1114
        %v1116 = vadd.f32 %v1112, %v1115
        %vm1117 = vweird.f32 %v968
        %vm1118 = vweird.f32 %v1112
        %vm1119 = vmor %vm1117, %vm1118
        %v1120 = vsel %vm1119, %v1112, %v1116
        %v1121 = vand.u32 2147483647, %v968
        %vm1122 = vcmp.eq.f32.partialorder %v1121, 8.507059e+37
        %v1123 = vand.u32 %v968, 2147483648
        %v1124 = vor.u32 1.1754944e-38, %v1123
        %v1125 = vsel %vm1122, %v1124, %v1120
        %v1126 = vmul.f32 1.0, %v1125
        %v1127 = vrcp.pop %v969
        %v1128 = vmul.f32 %v969, %v1127
        %v1129 = vsub.f32 1.0, %v1128
        %v1130 = vmul.f32 %v1127, %v1129
        %v1131 = vadd.f32 %v1127, %v1130
        %vm1132 = vweird.f32 %v969
        %vm1133 = vweird.f32 %v1127
        %vm1134 = vmor %vm1132, %vm1133
        %v1135 = vsel %vm1134, %v1127, %v1131
        %v1136 = vand.u32 2147483647, %v969
        %vm1137 = vcmp.eq.f32.partialorder %v1136, 8.507059e+37
        %v1138 = vand.u32 %v969, 2147483648
        %v1139 = vor.u32 1.1754944e-38, %v1138
        %v1140 = vsel %vm1137, %v1139, %v1135
        %v1141 = vmul.f32 1.0, %v1140
        %v1142 = vrcp.pop %v970
        %v1143 = vmul.f32 %v970, %v1142
        %v1144 = vsub.f32 1.0, %v1143
        %v1145 = vmul.f32 %v1142, %v1144
        %v1146 = vadd.f32 %v1142, %v1145
        %vm1147 = vweird.f32 %v970
        %vm1148 = vweird.f32 %v1142
        %vm1149 = vmor %vm1147, %vm1148
        %v1150 = vsel %vm1149, %v1142, %v1146
        %v1151 = vand.u32 2147483647, %v970
        %vm1152 = vcmp.eq.f32.partialorder %v1151, 8.507059e+37
        %v1153 = vand.u32 %v970, 2147483648
        %v1154 = vor.u32 1.1754944e-38, %v1153
        %v1155 = vsel %vm1152, %v1154, %v1150
        %v1156 = vmul.f32 1.0, %v1155
        %v1157 = vrcp.pop %v971
        %v1158 = vmul.f32 %v971, %v1157
        %v1159 = vsub.f32 1.0, %v1158
        %v1160 = vmul.f32 %v1157, %v1159
        %v1161 = vadd.f32 %v1157, %v1160
        %vm1162 = vweird.f32 %v971
        %vm1163 = vweird.f32 %v1157
        %vm1164 = vmor %vm1162, %vm1163
        %v1165 = vsel %vm1164, %v1157, %v1161
        %v1166 = vand.u32 2147483647, %v971
        %vm1167 = vcmp.eq.f32.partialorder %v1166, 8.507059e+37
        %v1168 = vand.u32 %v971, 2147483648
        %v1169 = vor.u32 1.1754944e-38, %v1168
        %v1170 = vsel %vm1167, %v1169, %v1165
        %v1171 = vmul.f32 1.0, %v1170
        %v1172 = vrcp.pop %v972
        %v1173 = vmul.f32 %v972, %v1172
        %v1174 = vsub.f32 1.0, %v1173
        %v1175 = vmul.f32 %v1172, %v1174
        %v1176 = vadd.f32 %v1172, %v1175
        %vm1177 = vweird.f32 %v972
        %vm1178 = vweird.f32 %v1172
        %vm1179 = vmor %vm1177, %vm1178
        %v1180 = vsel %vm1179, %v1172, %v1176
        %v1181 = vand.u32 2147483647, %v972
        %vm1182 = vcmp.eq.f32.partialorder %v1181, 8.507059e+37
        %v1183 = vand.u32 %v972, 2147483648
        %v1184 = vor.u32 1.1754944e-38, %v1183
        %v1185 = vsel %vm1182, %v1184, %v1180
        %v1186 = vmul.f32 1.0, %v1185
        %v1187 = vrcp.pop %v973
        %v1188 = vmul.f32 %v973, %v1187
        %v1189 = vsub.f32 1.0, %v1188
        %v1190 = vmul.f32 %v1187, %v1189
        %v1191 = vadd.f32 %v1187, %v1190
        %vm1192 = vweird.f32 %v973
        %vm1193 = vweird.f32 %v1187
        %vm1194 = vmor %vm1192, %vm1193
        %v1195 = vsel %vm1194, %v1187, %v1191
        %v1196 = vand.u32 2147483647, %v973
        %vm1197 = vcmp.eq.f32.partialorder %v1196, 8.507059e+37
        %v1198 = vand.u32 %v973, 2147483648
        %v1199 = vor.u32 1.1754944e-38, %v1198
        %v1200 = vsel %vm1197, %v1199, %v1195
        %v1201 = vmul.f32 1.0, %v1200
        %v1202 = vrcp.pop %v974
        %v1203 = vmul.f32 %v974, %v1202
        %v1204 = vsub.f32 1.0, %v1203
        %v1205 = vmul.f32 %v1202, %v1204
        %v1206 = vadd.f32 %v1202, %v1205
        %vm1207 = vweird.f32 %v974
        %vm1208 = vweird.f32 %v1202
        %vm1209 = vmor %vm1207, %vm1208
        %v1210 = vsel %vm1209, %v1202, %v1206
        %v1211 = vand.u32 2147483647, %v974
        %vm1212 = vcmp.eq.f32.partialorder %v1211, 8.507059e+37
        %v1213 = vand.u32 %v974, 2147483648
        %v1214 = vor.u32 1.1754944e-38, %v1213
        %v1215 = vsel %vm1212, %v1214, %v1210
        %v1216 = vmul.f32 1.0, %v1215
        %v1217 = vrcp.pop %v975
        %v1218 = vmul.f32 %v975, %v1217
        %v1219 = vsub.f32 1.0, %v1218
        %v1220 = vmul.f32 %v1217, %v1219
        %v1221 = vadd.f32 %v1217, %v1220
        %vm1222 = vweird.f32 %v975
        %vm1223 = vweird.f32 %v1217
        %vm1224 = vmor %vm1222, %vm1223
        %v1225 = vsel %vm1224, %v1217, %v1221
        %v1226 = vand.u32 2147483647, %v975
        %vm1227 = vcmp.eq.f32.partialorder %v1226, 8.507059e+37
        %v1228 = vand.u32 %v975, 2147483648
        %v1229 = vor.u32 1.1754944e-38, %v1228
        %v1230 = vsel %vm1227, %v1229, %v1225
        %v1231 = vmul.f32 1.0, %v1230
        %v1232 = vrcp.pop %v976
        %v1233 = vmul.f32 %v976, %v1232
        %v1234 = vsub.f32 1.0, %v1233
        %v1235 = vmul.f32 %v1232, %v1234
        %v1236 = vadd.f32 %v1232, %v1235
        %vm1237 = vweird.f32 %v976
        %vm1238 = vweird.f32 %v1232
        %vm1239 = vmor %vm1237, %vm1238
        %v1240 = vsel %vm1239, %v1232, %v1236
        %v1241 = vand.u32 2147483647, %v976
        %vm1242 = vcmp.eq.f32.partialorder %v1241, 8.507059e+37
        %v1243 = vand.u32 %v976, 2147483648
        %v1244 = vor.u32 1.1754944e-38, %v1243
        %v1245 = vsel %vm1242, %v1244, %v1240
        %v1246 = vmul.f32 1.0, %v1245
        %v1247 = vrcp.pop %v977
        %v1248 = vmul.f32 %v977, %v1247
        %v1249 = vsub.f32 1.0, %v1248
        %v1250 = vmul.f32 %v1247, %v1249
        %v1251 = vadd.f32 %v1247, %v1250
        %vm1252 = vweird.f32 %v977
        %vm1253 = vweird.f32 %v1247
        %vm1254 = vmor %vm1252, %vm1253
        %v1255 = vsel %vm1254, %v1247, %v1251
        %v1256 = vand.u32 2147483647, %v977
        %vm1257 = vcmp.eq.f32.partialorder %v1256, 8.507059e+37
        %v1258 = vand.u32 %v977, 2147483648
        %v1259 = vor.u32 1.1754944e-38, %v1258
        %v1260 = vsel %vm1257, %v1259, %v1255
        %v1261 = vmul.f32 1.0, %v1260
        %v1262 = vrcp.pop %v978
        %v1263 = vmul.f32 %v978, %v1262
        %v1264 = vsub.f32 1.0, %v1263
        %v1265 = vmul.f32 %v1262, %v1264
        %v1266 = vadd.f32 %v1262, %v1265
        %vm1267 = vweird.f32 %v978
        %vm1268 = vweird.f32 %v1262
        %vm1269 = vmor %vm1267, %vm1268
        %v1270 = vsel %vm1269, %v1262, %v1266
        %v1271 = vand.u32 2147483647, %v978
        %vm1272 = vcmp.eq.f32.partialorder %v1271, 8.507059e+37
        %v1273 = vand.u32 %v978, 2147483648
        %v1274 = vor.u32 1.1754944e-38, %v1273
        %v1275 = vsel %vm1272, %v1274, %v1270
        %v1276 = vmul.f32 1.0, %v1275
        %v1277 = vrcp.pop %v979
        %v1278 = vmul.f32 %v979, %v1277
        %v1279 = vsub.f32 1.0, %v1278
        %v1280 = vmul.f32 %v1277, %v1279
        %v1281 = vadd.f32 %v1277, %v1280
        %vm1282 = vweird.f32 %v979
        %vm1283 = vweird.f32 %v1277
        %vm1284 = vmor %vm1282, %vm1283
        %v1285 = vsel %vm1284, %v1277, %v1281
        %v1286 = vand.u32 2147483647, %v979
        %vm1287 = vcmp.eq.f32.partialorder %v1286, 8.507059e+37
        %v1288 = vand.u32 %v979, 2147483648
        %v1289 = vor.u32 1.1754944e-38, %v1288
        %v1290 = vsel %vm1287, %v1289, %v1285
        %v1291 = vmul.f32 1.0, %v1290
        %v1292 = vrcp.pop %v980
        %v1293 = vmul.f32 %v980, %v1292
        %v1294 = vsub.f32 1.0, %v1293
        %v1295 = vmul.f32 %v1292, %v1294
        %v1296 = vadd.f32 %v1292, %v1295
        %vm1297 = vweird.f32 %v980
        %vm1298 = vweird.f32 %v1292
        %vm1299 = vmor %vm1297, %vm1298
        %v1300 = vsel %vm1299, %v1292, %v1296
        %v1301 = vand.u32 2147483647, %v980
        %vm1302 = vcmp.eq.f32.partialorder %v1301, 8.507059e+37
        %v1303 = vand.u32 %v980, 2147483648
        %v1304 = vor.u32 1.1754944e-38, %v1303
        %v1305 = vsel %vm1302, %v1304, %v1300
        %v1306 = vmul.f32 1.0, %v1305
        %v1307 = vrcp.pop %v981
        %v1308 = vmul.f32 %v981, %v1307
        %v1309 = vsub.f32 1.0, %v1308
        %v1310 = vmul.f32 %v1307, %v1309
        %v1311 = vadd.f32 %v1307, %v1310
        %vm1312 = vweird.f32 %v981
        %vm1313 = vweird.f32 %v1307
        %vm1314 = vmor %vm1312, %vm1313
        %v1315 = vsel %vm1314, %v1307, %v1311
        %v1316 = vand.u32 2147483647, %v981
        %vm1317 = vcmp.eq.f32.partialorder %v1316, 8.507059e+37
        %v1318 = vand.u32 %v981, 2147483648
        %v1319 = vor.u32 1.1754944e-38, %v1318
        %v1320 = vsel %vm1317, %v1319, %v1315
        %v1321 = vmul.f32 1.0, %v1320
        %v1322 = vrcp.pop %v982
        %v1323 = vmul.f32 %v982, %v1322
        %v1324 = vsub.f32 1.0, %v1323
        %v1325 = vmul.f32 %v1322, %v1324
        %v1326 = vadd.f32 %v1322, %v1325
        %vm1327 = vweird.f32 %v982
        %vm1328 = vweird.f32 %v1322
        %vm1329 = vmor %vm1327, %vm1328
        %v1330 = vsel %vm1329, %v1322, %v1326
        %v1331 = vand.u32 2147483647, %v982
        %vm1332 = vcmp.eq.f32.partialorder %v1331, 8.507059e+37
        %v1333 = vand.u32 %v982, 2147483648
        %v1334 = vor.u32 1.1754944e-38, %v1333
        %v1335 = vsel %vm1332, %v1334, %v1330
        %v1336 = vmul.f32 1.0, %v1335
        %v1337 = vrcp.pop %v983
        %v1338 = vmul.f32 %v983, %v1337
        %v1339 = vsub.f32 1.0, %v1338
        %v1340 = vmul.f32 %v1337, %v1339
        %v1341 = vadd.f32 %v1337, %v1340
        %vm1342 = vweird.f32 %v983
        %vm1343 = vweird.f32 %v1337
        %vm1344 = vmor %vm1342, %vm1343
        %v1345 = vsel %vm1344, %v1337, %v1341
        %v1346 = vand.u32 2147483647, %v983
        %vm1347 = vcmp.eq.f32.partialorder %v1346, 8.507059e+37
        %v1348 = vand.u32 %v983, 2147483648
        %v1349 = vor.u32 1.1754944e-38, %v1348
        %v1350 = vsel %vm1347, %v1349, %v1345
        %v1351 = vmul.f32 1.0, %v1350
        %v1352 = vrcp.pop %v984
        %v1353 = vmul.f32 %v984, %v1352
        %v1354 = vsub.f32 1.0, %v1353
        %v1355 = vmul.f32 %v1352, %v1354
        %v1356 = vadd.f32 %v1352, %v1355
        %vm1357 = vweird.f32 %v984
        %vm1358 = vweird.f32 %v1352
        %vm1359 = vmor %vm1357, %vm1358
        %v1360 = vsel %vm1359, %v1352, %v1356
        %v1361 = vand.u32 2147483647, %v984
        %vm1362 = vcmp.eq.f32.partialorder %v1361, 8.507059e+37
        %v1363 = vand.u32 %v984, 2147483648
        %v1364 = vor.u32 1.1754944e-38, %v1363
        %v1365 = vsel %vm1362, %v1364, %v1360
        %v1366 = vmul.f32 1.0, %v1365
        %v1367 = vrcp.pop %v985
        %v1368 = vmul.f32 %v985, %v1367
        %v1369 = vsub.f32 1.0, %v1368
        %v1370 = vmul.f32 %v1367, %v1369
        %v1371 = vadd.f32 %v1367, %v1370
        %vm1372 = vweird.f32 %v985
        %vm1373 = vweird.f32 %v1367
        %vm1374 = vmor %vm1372, %vm1373
        %v1375 = vsel %vm1374, %v1367, %v1371
        %v1376 = vand.u32 2147483647, %v985
        %vm1377 = vcmp.eq.f32.partialorder %v1376, 8.507059e+37
        %v1378 = vand.u32 %v985, 2147483648
        %v1379 = vor.u32 1.1754944e-38, %v1378
        %v1380 = vsel %vm1377, %v1379, %v1375
        %v1381 = vmul.f32 1.0, %v1380
        %v1382 = vrcp.pop %v986
        %v1383 = vmul.f32 %v986, %v1382
        %v1384 = vsub.f32 1.0, %v1383
        %v1385 = vmul.f32 %v1382, %v1384
        %v1386 = vadd.f32 %v1382, %v1385
        %vm1387 = vweird.f32 %v986
        %vm1388 = vweird.f32 %v1382
        %vm1389 = vmor %vm1387, %vm1388
        %v1390 = vsel %vm1389, %v1382, %v1386
        %v1391 = vand.u32 2147483647, %v986
        %vm1392 = vcmp.eq.f32.partialorder %v1391, 8.507059e+37
        %v1393 = vand.u32 %v986, 2147483648
        %v1394 = vor.u32 1.1754944e-38, %v1393
        %v1395 = vsel %vm1392, %v1394, %v1390
        %v1396 = vmul.f32 1.0, %v1395
        %v1397 = vrcp.pop %v987
        %v1398 = vmul.f32 %v987, %v1397
        %v1399 = vsub.f32 1.0, %v1398
        %v1400 = vmul.f32 %v1397, %v1399
        %v1401 = vadd.f32 %v1397, %v1400
        %vm1402 = vweird.f32 %v987
        %vm1403 = vweird.f32 %v1397
        %vm1404 = vmor %vm1402, %vm1403
        %v1405 = vsel %vm1404, %v1397, %v1401
        %v1406 = vand.u32 2147483647, %v987
        %vm1407 = vcmp.eq.f32.partialorder %v1406, 8.507059e+37
        %v1408 = vand.u32 %v987, 2147483648
        %v1409 = vor.u32 1.1754944e-38, %v1408
        %v1410 = vsel %vm1407, %v1409, %v1405
        %v1411 = vmul.f32 1.0, %v1410
        %v1412 = vrcp.pop %v988
        %v1413 = vmul.f32 %v988, %v1412
        %v1414 = vsub.f32 1.0, %v1413
        %v1415 = vmul.f32 %v1412, %v1414
        %v1416 = vadd.f32 %v1412, %v1415
        %vm1417 = vweird.f32 %v988
        %vm1418 = vweird.f32 %v1412
        %vm1419 = vmor %vm1417, %vm1418
        %v1420 = vsel %vm1419, %v1412, %v1416
        %v1421 = vand.u32 2147483647, %v988
        %vm1422 = vcmp.eq.f32.partialorder %v1421, 8.507059e+37
        %v1423 = vand.u32 %v988, 2147483648
        %v1424 = vor.u32 1.1754944e-38, %v1423
        %v1425 = vsel %vm1422, %v1424, %v1420
        %v1426 = vmul.f32 1.0, %v1425
        %v1427 = vrcp.pop %v989
        %v1428 = vmul.f32 %v989, %v1427
        %v1429 = vsub.f32 1.0, %v1428
        %v1430 = vmul.f32 %v1427, %v1429
        %v1431 = vadd.f32 %v1427, %v1430
        %vm1432 = vweird.f32 %v989
        %vm1433 = vweird.f32 %v1427
        %vm1434 = vmor %vm1432, %vm1433
        %v1435 = vsel %vm1434, %v1427, %v1431
        %v1436 = vand.u32 2147483647, %v989
        %vm1437 = vcmp.eq.f32.partialorder %v1436, 8.507059e+37
        %v1438 = vand.u32 %v989, 2147483648
        %v1439 = vor.u32 1.1754944e-38, %v1438
        %v1440 = vsel %vm1437, %v1439, %v1435
        %v1441 = vmul.f32 1.0, %v1440
        %v1442 = vrcp.pop %v990
        %v1443 = vmul.f32 %v990, %v1442
        %v1444 = vsub.f32 1.0, %v1443
        %v1445 = vmul.f32 %v1442, %v1444
        %v1446 = vadd.f32 %v1442, %v1445
        %vm1447 = vweird.f32 %v990
        %vm1448 = vweird.f32 %v1442
        %vm1449 = vmor %vm1447, %vm1448
        %v1450 = vsel %vm1449, %v1442, %v1446
        %v1451 = vand.u32 2147483647, %v990
        %vm1452 = vcmp.eq.f32.partialorder %v1451, 8.507059e+37
        %v1453 = vand.u32 %v990, 2147483648
        %v1454 = vor.u32 1.1754944e-38, %v1453
        %v1455 = vsel %vm1452, %v1454, %v1450
        %v1456 = vmul.f32 1.0, %v1455
        %v1457 = vrcp.pop %v991
        %v1458 = vmul.f32 %v991, %v1457
        %v1459 = vsub.f32 1.0, %v1458
        %v1460 = vmul.f32 %v1457, %v1459
        %v1461 = vadd.f32 %v1457, %v1460
        %vm1462 = vweird.f32 %v991
        %vm1463 = vweird.f32 %v1457
        %vm1464 = vmor %vm1462, %vm1463
        %v1465 = vsel %vm1464, %v1457, %v1461
        %v1466 = vand.u32 2147483647, %v991
        %vm1467 = vcmp.eq.f32.partialorder %v1466, 8.507059e+37
        %v1468 = vand.u32 %v991, 2147483648
        %v1469 = vor.u32 1.1754944e-38, %v1468
        %v1470 = vsel %vm1467, %v1469, %v1465
        %v1471 = vmul.f32 1.0, %v1470
        %v1472 = vmul.f32 %v584, %v1006
        %v1473 = vmul.f32 %v649, %v1021
        %v1474 = vmul.f32 %v587, %v1036
        %v1475 = vmul.f32 %v652, %v1051
        %v1476 = vmul.f32 %v590, %v1066
        %v1477 = vmul.f32 %v655, %v1081
        %v1478 = vmul.f32 %v593, %v1096
        %v1479 = vmul.f32 %v658, %v1111
        %v1480 = vmul.f32 %v596, %v1126
        %v1481 = vmul.f32 %v661, %v1141
        %v1482 = vmul.f32 %v599, %v1156
        %v1483 = vmul.f32 %v664, %v1171
        %v1484 = vmul.f32 %v602, %v1186
        %v1485 = vmul.f32 %v667, %v1201
        %v1486 = vmul.f32 %v605, %v1216
        %v1487 = vmul.f32 %v670, %v1231
        %v1488 = vmul.f32 %v608, %v1246
        %v1489 = vmul.f32 %v673, %v1261
        %v1490 = vmul.f32 %v611, %v1276
        %v1491 = vmul.f32 %v676, %v1291
        %v1492 = vmul.f32 %v614, %v1306
        %v1493 = vmul.f32 %v679, %v1321
        %v1494 = vmul.f32 %v617, %v1336
        %v1495 = vmul.f32 %v682, %v1351
        %v1496 = vmul.f32 %v620, %v1366
        %v1497 = vmul.f32 %v685, %v1381
        %v1498 = vmul.f32 %v623, %v1396
        %v1499 = vmul.f32 %v688, %v1411
        %v1500 = vmul.f32 %v626, %v1426
        %v1501 = vmul.f32 %v691, %v1441
        %v1502 = vmul.f32 %v629, %v1456
        %v1503 = vmul.f32 %v694, %v1471
        %v1504 = vmul.f32 %v1472, %v752
        %v1505 = vmul.f32 %v1473, %v817
        %v1506 = vmul.f32 %v1474, %v755
        %v1507 = vmul.f32 %v1475, %v820
        %v1508 = vmul.f32 %v1476, %v758
        %v1509 = vmul.f32 %v1477, %v823
        %v1510 = vmul.f32 %v1478, %v761
        %v1511 = vmul.f32 %v1479, %v826
        %v1512 = vmul.f32 %v1480, %v764
        %v1513 = vmul.f32 %v1481, %v829
        %v1514 = vmul.f32 %v1482, %v767
        %v1515 = vmul.f32 %v1483, %v832
        %v1516 = vmul.f32 %v1484, %v770
        %v1517 = vmul.f32 %v1485, %v835
        %v1518 = vmul.f32 %v1486, %v773
        %v1519 = vmul.f32 %v1487, %v838
        %v1520 = vmul.f32 %v1488, %v776
        %v1521 = vmul.f32 %v1489, %v841
        %v1522 = vmul.f32 %v1490, %v779
        %v1523 = vmul.f32 %v1491, %v844
        %v1524 = vmul.f32 %v1492, %v782
        %v1525 = vmul.f32 %v1493, %v847
        %v1526 = vmul.f32 %v1494, %v785
        %v1527 = vmul.f32 %v1495, %v850
        %v1528 = vmul.f32 %v1496, %v788
        %v1529 = vmul.f32 %v1497, %v853
        %v1530 = vmul.f32 %v1498, %v791
        %v1531 = vmul.f32 %v1499, %v856
        %v1532 = vmul.f32 %v1500, %v794
        %v1533 = vmul.f32 %v1501, %v859
        %v1534 = vmul.f32 %v1502, %v797
        %v1535 = vmul.f32 %v1503, %v862
        %v1536 = vld [vmem:[#allocation2] sm:$0xff]
        %v1537 = vld [vmem:[#allocation2 + $0x8] sm:$0xff]
        %v1538 = vld [vmem:[#allocation2 + $0x10] sm:$0xff]
        %v1539 = vld [vmem:[#allocation2 + $0x18] sm:$0xff]
        %v1540 = vld [vmem:[#allocation2 + $0x20] sm:$0xff]
        %v1541 = vld [vmem:[#allocation2 + $0x28] sm:$0xff]
        %v1542 = vld [vmem:[#allocation2 + $0x30] sm:$0xff]
        %v1543 = vld [vmem:[#allocation2 + $0x38] sm:$0xff]
        %v1544 = vld [vmem:[#allocation2 + $0x40] sm:$0xff]
        %v1545 = vld [vmem:[#allocation2 + $0x48] sm:$0xff]
        %v1546 = vld [vmem:[#allocation2 + $0x50] sm:$0xff]
        %v1547 = vld [vmem:[#allocation2 + $0x58] sm:$0xff]
        %v1548 = vld [vmem:[#allocation2 + $0x60] sm:$0xff]
        %v1549 = vld [vmem:[#allocation2 + $0x68] sm:$0xff]
        %v1550 = vld [vmem:[#allocation2 + $0x70] sm:$0xff]
        %v1551 = vld [vmem:[#allocation2 + $0x78] sm:$0xff]
        %v1552 = vld [vmem:[%s438] sm:$0xff]
        %v1553 = vld [vmem:[%s438 + $0x8] sm:$0xff]
        %v1554 = vld [vmem:[%s438 + $0x10] sm:$0xff]
        %v1555 = vld [vmem:[%s438 + $0x18] sm:$0xff]
        %v1556 = vld [vmem:[%s438 + $0x20] sm:$0xff]
        %v1557 = vld [vmem:[%s438 + $0x28] sm:$0xff]
        %v1558 = vld [vmem:[%s438 + $0x30] sm:$0xff]
        %v1559 = vld [vmem:[%s438 + $0x38] sm:$0xff]
        %v1560 = vld [vmem:[%s438 + $0x40] sm:$0xff]
        %v1561 = vld [vmem:[%s438 + $0x48] sm:$0xff]
        %v1562 = vld [vmem:[%s438 + $0x50] sm:$0xff]
        %v1563 = vld [vmem:[%s438 + $0x58] sm:$0xff]
        %v1564 = vld [vmem:[%s438 + $0x60] sm:$0xff]
        %v1565 = vld [vmem:[%s438 + $0x68] sm:$0xff]
        %v1566 = vld [vmem:[%s438 + $0x70] sm:$0xff]
        %v1567 = vld [vmem:[%s438 + $0x78] sm:$0xff]
        %v1568 = vld [vmem:[%s438 + $0x80] sm:$0xff]
        %v1569 = vld [vmem:[%s438 + $0x88] sm:$0xff]
        %v1570 = vld [vmem:[%s438 + $0x90] sm:$0xff]
        %v1571 = vld [vmem:[%s438 + $0x98] sm:$0xff]
        %v1572 = vld [vmem:[%s438 + $0xa0] sm:$0xff]
        %v1573 = vld [vmem:[%s438 + $0xa8] sm:$0xff]
        %v1574 = vld [vmem:[%s438 + $0xb0] sm:$0xff]
        %v1575 = vld [vmem:[%s438 + $0xb8] sm:$0xff]
        %v1576 = vld [vmem:[%s438 + $0xc0] sm:$0xff]
        %v1577 = vld [vmem:[%s438 + $0xc8] sm:$0xff]
        %v1578 = vld [vmem:[%s438 + $0xd0] sm:$0xff]
        %v1579 = vld [vmem:[%s438 + $0xd8] sm:$0xff]
        %v1580 = vld [vmem:[%s438 + $0xe0] sm:$0xff]
        %v1581 = vld [vmem:[%s438 + $0xe8] sm:$0xff]
        %v1582 = vld [vmem:[%s438 + $0xf0] sm:$0xff]
        %v1583 = vld [vmem:[%s438 + $0xf8] sm:$0xff]
        %1584 = vmatpush.msra.mxu0 %v1567
        %1585 = vmatpush.msra.mxu0 %v1566
        %1586 = vmatpush.msra.mxu0 %v1565
        %1587 = vmatpush.msra.mxu0 %v1564
        %1588 = vmatpush.msra.mxu0 %v1563
        %1589 = vmatpush.msra.mxu0 %v1562
        %1590 = vmatpush.msra.mxu0 %v1561
        %1591 = vmatpush.msra.mxu0 %v1560
        %1592 = vmatpush.msra.mxu0 %v1559
        %1593 = vmatpush.msra.mxu0 %v1558
        %1594 = vmatpush.msra.mxu0 %v1557
        %1595 = vmatpush.msra.mxu0 %v1556
        %1596 = vmatpush.msra.mxu0 %v1555
        %1597 = vmatpush.msra.mxu0 %v1554
        %1598 = vmatpush.msra.mxu0 %v1553
        %1599 = vmatpush.msra.mxu0 %v1552
        %1600 = vmatmul.f32.gmra.mxu0 %v1504
        %v1601 = vpop.f32.mrf.mxu0
        %v1602 = vadd.f32 0.0, %v1601
        %1603 = vmatmul.f32.gmra.mxu0 %v1506
        %v1604 = vpop.f32.mrf.mxu0
        %v1605 = vadd.f32 0.0, %v1604
        %1606 = vmatmul.f32.gmra.mxu0 %v1508
        %v1607 = vpop.f32.mrf.mxu0
        %v1608 = vadd.f32 0.0, %v1607
        %1609 = vmatmul.f32.gmra.mxu0 %v1510
        %v1610 = vpop.f32.mrf.mxu0
        %v1611 = vadd.f32 0.0, %v1610
        %1612 = vmatmul.f32.gmra.mxu0 %v1512
        %v1613 = vpop.f32.mrf.mxu0
        %v1614 = vadd.f32 0.0, %v1613
        %1615 = vmatmul.f32.gmra.mxu0 %v1514
        %v1616 = vpop.f32.mrf.mxu0
        %v1617 = vadd.f32 0.0, %v1616
        %1618 = vmatmul.f32.gmra.mxu0 %v1516
        %v1619 = vpop.f32.mrf.mxu0
        %v1620 = vadd.f32 0.0, %v1619
        %1621 = vmatmul.f32.gmra.mxu0 %v1518
        %v1622 = vpop.f32.mrf.mxu0
        %v1623 = vadd.f32 0.0, %v1622
        %1624 = vmatmul.f32.gmra.mxu0 %v1520
        %v1625 = vpop.f32.mrf.mxu0
        %v1626 = vadd.f32 0.0, %v1625
        %1627 = vmatmul.f32.gmra.mxu0 %v1522
        %v1628 = vpop.f32.mrf.mxu0
        %v1629 = vadd.f32 0.0, %v1628
        %1630 = vmatmul.f32.gmra.mxu0 %v1524
        %v1631 = vpop.f32.mrf.mxu0
        %v1632 = vadd.f32 0.0, %v1631
        %1633 = vmatmul.f32.gmra.mxu0 %v1526
        %v1634 = vpop.f32.mrf.mxu0
        %v1635 = vadd.f32 0.0, %v1634
        %1636 = vmatmul.f32.gmra.mxu0 %v1528
        %v1637 = vpop.f32.mrf.mxu0
        %v1638 = vadd.f32 0.0, %v1637
        %1639 = vmatmul.f32.gmra.mxu0 %v1530
        %v1640 = vpop.f32.mrf.mxu0
        %v1641 = vadd.f32 0.0, %v1640
        %1642 = vmatmul.f32.gmra.mxu0 %v1532
        %v1643 = vpop.f32.mrf.mxu0
        %v1644 = vadd.f32 0.0, %v1643
        %1645 = vmatmul.f32.gmra.mxu0 %v1534
        %v1646 = vpop.f32.mrf.mxu0
        %v1647 = vadd.f32 0.0, %v1646
        %1648 = vdwg.mxu0
        %1649 = vmatpush.msra.mxu0 %v1583
        %1650 = vmatpush.msra.mxu0 %v1582
        %1651 = vmatpush.msra.mxu0 %v1581
        %1652 = vmatpush.msra.mxu0 %v1580
        %1653 = vmatpush.msra.mxu0 %v1579
        %1654 = vmatpush.msra.mxu0 %v1578
        %1655 = vmatpush.msra.mxu0 %v1577
        %1656 = vmatpush.msra.mxu0 %v1576
        %1657 = vmatpush.msra.mxu0 %v1575
        %1658 = vmatpush.msra.mxu0 %v1574
        %1659 = vmatpush.msra.mxu0 %v1573
        %1660 = vmatpush.msra.mxu0 %v1572
        %1661 = vmatpush.msra.mxu0 %v1571
        %1662 = vmatpush.msra.mxu0 %v1570
        %1663 = vmatpush.msra.mxu0 %v1569
        %1664 = vmatpush.msra.mxu0 %v1568
        %1665 = vmatmul.f32.gmra.mxu0 %v1505
        %v1666 = vpop.f32.mrf.mxu0
        %v1667 = vadd.f32 %v1602, %v1666
        %1668 = vmatmul.f32.gmra.mxu0 %v1507
        %v1669 = vpop.f32.mrf.mxu0
        %v1670 = vadd.f32 %v1605, %v1669
        %1671 = vmatmul.f32.gmra.mxu0 %v1509
        %v1672 = vpop.f32.mrf.mxu0
        %v1673 = vadd.f32 %v1608, %v1672
        %1674 = vmatmul.f32.gmra.mxu0 %v1511
        %v1675 = vpop.f32.mrf.mxu0
        %v1676 = vadd.f32 %v1611, %v1675
        %1677 = vmatmul.f32.gmra.mxu0 %v1513
        %v1678 = vpop.f32.mrf.mxu0
        %v1679 = vadd.f32 %v1614, %v1678
        %1680 = vmatmul.f32.gmra.mxu0 %v1515
        %v1681 = vpop.f32.mrf.mxu0
        %v1682 = vadd.f32 %v1617, %v1681
        %1683 = vmatmul.f32.gmra.mxu0 %v1517
        %v1684 = vpop.f32.mrf.mxu0
        %v1685 = vadd.f32 %v1620, %v1684
        %1686 = vmatmul.f32.gmra.mxu0 %v1519
        %v1687 = vpop.f32.mrf.mxu0
        %v1688 = vadd.f32 %v1623, %v1687
        %1689 = vmatmul.f32.gmra.mxu0 %v1521
        %v1690 = vpop.f32.mrf.mxu0
        %v1691 = vadd.f32 %v1626, %v1690
        %1692 = vmatmul.f32.gmra.mxu0 %v1523
        %v1693 = vpop.f32.mrf.mxu0
        %v1694 = vadd.f32 %v1629, %v1693
        %1695 = vmatmul.f32.gmra.mxu0 %v1525
        %v1696 = vpop.f32.mrf.mxu0
        %v1697 = vadd.f32 %v1632, %v1696
        %1698 = vmatmul.f32.gmra.mxu0 %v1527
        %v1699 = vpop.f32.mrf.mxu0
        %v1700 = vadd.f32 %v1635, %v1699
        %1701 = vmatmul.f32.gmra.mxu0 %v1529
        %v1702 = vpop.f32.mrf.mxu0
        %v1703 = vadd.f32 %v1638, %v1702
        %1704 = vmatmul.f32.gmra.mxu0 %v1531
        %v1705 = vpop.f32.mrf.mxu0
        %v1706 = vadd.f32 %v1641, %v1705
        %1707 = vmatmul.f32.gmra.mxu0 %v1533
        %v1708 = vpop.f32.mrf.mxu0
        %v1709 = vadd.f32 %v1644, %v1708
        %1710 = vmatmul.f32.gmra.mxu0 %v1535
        %v1711 = vpop.f32.mrf.mxu0
        %v1712 = vadd.f32 %v1647, %v1711
        %1713 = vdwg.mxu0
        %v1714 = vadd.f32 %v1536, %v1667
        %v1715 = vadd.f32 %v1537, %v1670
        %v1716 = vadd.f32 %v1538, %v1673
        %v1717 = vadd.f32 %v1539, %v1676
        %v1718 = vadd.f32 %v1540, %v1679
        %v1719 = vadd.f32 %v1541, %v1682
        %v1720 = vadd.f32 %v1542, %v1685
        %v1721 = vadd.f32 %v1543, %v1688
        %v1722 = vadd.f32 %v1544, %v1691
        %v1723 = vadd.f32 %v1545, %v1694
        %v1724 = vadd.f32 %v1546, %v1697
        %v1725 = vadd.f32 %v1547, %v1700
        %v1726 = vadd.f32 %v1548, %v1703
        %v1727 = vadd.f32 %v1549, %v1706
        %v1728 = vadd.f32 %v1550, %v1709
        %v1729 = vadd.f32 %v1551, %v1712
        %1730 = vst [vmem:[#allocation2] sm:$0xff] %v1714
        %1731 = vst [vmem:[#allocation2 + $0x8] sm:$0xff] %v1715
        %1732 = vst [vmem:[#allocation2 + $0x10] sm:$0xff] %v1716
        %1733 = vst [vmem:[#allocation2 + $0x18] sm:$0xff] %v1717
        %1734 = vst [vmem:[#allocation2 + $0x20] sm:$0xff] %v1718
        %1735 = vst [vmem:[#allocation2 + $0x28] sm:$0xff] %v1719
        %1736 = vst [vmem:[#allocation2 + $0x30] sm:$0xff] %v1720
        %1737 = vst [vmem:[#allocation2 + $0x38] sm:$0xff] %v1721
        %1738 = vst [vmem:[#allocation2 + $0x40] sm:$0xff] %v1722
        %1739 = vst [vmem:[#allocation2 + $0x48] sm:$0xff] %v1723
        %1740 = vst [vmem:[#allocation2 + $0x50] sm:$0xff] %v1724
        %1741 = vst [vmem:[#allocation2 + $0x58] sm:$0xff] %v1725
        %1742 = vst [vmem:[#allocation2 + $0x60] sm:$0xff] %v1726
        %1743 = vst [vmem:[#allocation2 + $0x68] sm:$0xff] %v1727
        %1744 = vst [vmem:[#allocation2 + $0x70] sm:$0xff] %v1728
        %1745 = vst [vmem:[#allocation2 + $0x78] sm:$0xff] %v1729
        %p1746 = scmp.eq.s32.totalorder %s34, 1
        // Predicated region
        $region77: #{mlp_forward.1} parent=47 // pred_check
          %p1747 = pneg %p1746
        $region78: #{mlp_forward.1} parent=47 // pred_check_branch
          %1749 = sbr.rel (%p1747) target = $region80
        $region79: #{mlp_forward.1} parent=47 // pred_region
          %v1750 = vld [vmem:[#allocation2] sm:$0xff]
          %v1751 = vld [vmem:[#allocation2 + $0x8] sm:$0xff]
          %v1752 = vld [vmem:[#allocation2 + $0x10] sm:$0xff]
          %v1753 = vld [vmem:[#allocation2 + $0x18] sm:$0xff]
          %v1754 = vld [vmem:[#allocation2 + $0x20] sm:$0xff]
          %v1755 = vld [vmem:[#allocation2 + $0x28] sm:$0xff]
          %v1756 = vld [vmem:[#allocation2 + $0x30] sm:$0xff]
          %v1757 = vld [vmem:[#allocation2 + $0x38] sm:$0xff]
          %v1758 = vld [vmem:[#allocation2 + $0x40] sm:$0xff]
          %v1759 = vld [vmem:[#allocation2 + $0x48] sm:$0xff]
          %v1760 = vld [vmem:[#allocation2 + $0x50] sm:$0xff]
          %v1761 = vld [vmem:[#allocation2 + $0x58] sm:$0xff]
          %v1762 = vld [vmem:[#allocation2 + $0x60] sm:$0xff]
          %v1763 = vld [vmem:[#allocation2 + $0x68] sm:$0xff]
          %v1764 = vld [vmem:[#allocation2 + $0x70] sm:$0xff]
          %v1765 = vld [vmem:[#allocation2 + $0x78] sm:$0xff]
          %v1766 = vld [vmem:[%s6] sm:$0x1]
          %v1768 = vperm.slane %v1766, 0
          %v1770 = vadd.f32 %v1750, %v1768
          %v1771 = vadd.f32 %v1751, %v1768
          %v1772 = vadd.f32 %v1752, %v1768
          %v1773 = vadd.f32 %v1753, %v1768
          %v1774 = vadd.f32 %v1754, %v1768
          %v1775 = vadd.f32 %v1755, %v1768
          %v1776 = vadd.f32 %v1756, %v1768
          %v1777 = vadd.f32 %v1757, %v1768
          %v1778 = vadd.f32 %v1758, %v1768
          %v1779 = vadd.f32 %v1759, %v1768
          %v1780 = vadd.f32 %v1760, %v1768
          %v1781 = vadd.f32 %v1761, %v1768
          %v1782 = vadd.f32 %v1762, %v1768
          %v1783 = vadd.f32 %v1763, %v1768
          %v1784 = vadd.f32 %v1764, %v1768
          %v1785 = vadd.f32 %v1765, %v1768
          %1786 = vst [vmem:[#allocation14] sm:$0xff] %v1770
          %1787 = vst [vmem:[#allocation14 + $0x8] sm:$0xff] %v1771
          %1788 = vst [vmem:[#allocation14 + $0x10] sm:$0xff] %v1772
          %1789 = vst [vmem:[#allocation14 + $0x18] sm:$0xff] %v1773
          %1790 = vst [vmem:[#allocation14 + $0x20] sm:$0xff] %v1774
          %1791 = vst [vmem:[#allocation14 + $0x28] sm:$0xff] %v1775
          %1792 = vst [vmem:[#allocation14 + $0x30] sm:$0xff] %v1776
          %1793 = vst [vmem:[#allocation14 + $0x38] sm:$0xff] %v1777
          %1794 = vst [vmem:[#allocation14 + $0x40] sm:$0xff] %v1778
          %1795 = vst [vmem:[#allocation14 + $0x48] sm:$0xff] %v1779
          %1796 = vst [vmem:[#allocation14 + $0x50] sm:$0xff] %v1780
          %1797 = vst [vmem:[#allocation14 + $0x58] sm:$0xff] %v1781
          %1798 = vst [vmem:[#allocation14 + $0x60] sm:$0xff] %v1782
          %1799 = vst [vmem:[#allocation14 + $0x68] sm:$0xff] %v1783
          %1800 = vst [vmem:[#allocation14 + $0x70] sm:$0xff] %v1784
          %1801 = vst [vmem:[#allocation14 + $0x78] sm:$0xff] %v1785
        $region80: #{mlp_forward.1} parent=47 // pred_fallthru
          _
        // Predicated region
        $region81: #{mlp_forward.1} parent=47 // pred_check
          %p1802 = pneg %p236
        $region82: #{mlp_forward.1} parent=47 // pred_check_branch
          %1804 = sbr.rel (%p1802) target = $region84
        $region83: #{mlp_forward.1} parent=47 // pred_region
          %s1805 = smul.u32 16, %s33
          %1807 = vsyncadd [#allocation5], 0
          %s1808 = smul.addr %s1805, 8
          %s1809 = scalar_lea.hbm %s7, %s1808
          %s1810 = sshll.u32 [#allocation14], 4
          %s1811 = int_to_ptr.vmem [resolvable:$true] %s1810
          %s1812 = sshll.u32 %s1809, 4
          %s1813 = int_to_ptr.hbm [resolvable:$true] %s1812
          %1818 = dma.vmem_to_hbm [thread:$0]  %s1811, 2048, %s1813, [#allocation5], 128, 128, 8
        $region84: #{mlp_forward.1} parent=47 // pred_fallthru
          _
        // Predicated region
        $region85: #{mlp_forward.1} parent=47 // pred_check
          %p1819 = pneg %p236
        $region86: #{mlp_forward.1} parent=47 // pred_check_branch
          %1821 = sbr.rel (%p1819) target = $region88
        $region87: #{mlp_forward.1} parent=47 // pred_region
          %1823 = dma.done [#allocation5], 2048
        $region88: #{mlp_forward.1} parent=47 // pred_fallthru
          _
      $region48: #{mlp_forward.1} parent=5 // pred_fallthru
        _
      %p1824 = scmp.le.s32.totalorder 2, %s24
      // Predicated region
      $region89: #{mlp_forward.1} parent=5 // pred_check
        %p1825 = pneg %p1824
      $region90: #{mlp_forward.1} parent=5 // pred_check_branch
        %1827 = sbr.rel (%p1825) target = $region92
      $region91: #{mlp_forward.1} parent=5 // pred_region
        %s1828 = ssub.s32 %s24, 2
      $region92: #{mlp_forward.1} parent=5 // pred_fallthru
        _
    $region6: #{mlp_forward.1} parent=1 // loop_footer
      %s28 = sadd.s32 1, %s24
    $region7: #{mlp_forward.1} parent=1 // loop_footer_branch
      %23 = sbr.rel target = $region3
    $region8: #{mlp_forward.1} parent=1 // loop_exit
      _
    %1829 = vsyncpa [#allocation4], 1
    %s1830 = scalar_lea.sflag [#allocation4], 1
    %1831 = vsyncpa %s1830, 1
    %1832 = vsyncpa [#allocation7], 1
    %s1833 = scalar_lea.sflag [#allocation7], 1
    %1834 = vsyncpa %s1833, 1
    %1835 = vsyncpa [#allocation10], 1
    %s1836 = scalar_lea.sflag [#allocation10], 1
    %1837 = vsyncpa %s1836, 1
    %1838 = vsyncpa [#allocation13], 1
    %s1839 = scalar_lea.sflag [#allocation13], 1
    %1840 = vsyncpa %s1839, 1
    %1841 = vsyncpa [#allocation5], 1
    %s1842 = scalar_lea.sflag [#allocation5], 1
    %1843 = vsyncpa %s1842, 1

</llo_original>
